<compile_context>
chip_gen: v7x
topology: tpu7x:2x2x1
jax: 0.10.0
libtpu: 0.0.40
codegen_flags: <defaults>
</compile_context>

<pallas_src>
import math
import functools

import jax
import jax.numpy as jnp
import numpy as np
from jax import lax
from jax.experimental import pallas as pl
from jax.experimental.pallas import tpu as pltpu

SCALE = math.sqrt(0.5)


def _pick_batch_block(B, T, target_lanes=1024):
    """Pick Bb (dividing B) with 128-aligned lane width Bb*T, preferring:
    nb = B/Bb >= 2 (even if possible, for v7x dual-TC) and lane width close to
    target_lanes.  Falls back to the whole batch when no aligned split exists."""
    step = 128 // math.gcd(T, 128)            # smallest Bb with (Bb*T) % 128 == 0
    cands = [bb for bb in range(step, B // 2 + 1, step) if B % bb == 0]
    if not cands:
        return B                              # cannot split with 128-aligned lanes
    fitting = [bb for bb in cands if bb * T <= target_lanes]
    if not fitting:
        return min(cands)
    # prefer an even number of grid steps (v7x: 2 TCs), then the widest lane block
    return max(fitting, key=lambda bb: ((B // bb) % 2 == 0, bb))


def _vmem_bytes_estimate(Bb, T, S, E, H, K, use_bf16):
    """Rough per-step VMEM bytes: 2x-buffered streams/outputs + 1x weights + live intermediates."""
    N = Bb * T
    cb = 2 if use_bf16 else 4
    stream_in = H * N * 4 + N * 4 + Bb * T * E * cb + 2 * Bb * S * E * cb
    stream_out = H * N * 4 + Bb * S * T * 4
    weights = (2 * H * K * H + E * H + H * E) * cb + (3 * H + E) * 4
    interm = (K * H * N + 4 * H * N + 3 * Bb * T * E + 2 * Bb * S * T) * 4
    return 2 * (stream_in + stream_out) + weights + interm


def _const_spec(shape, single_buffer):
    """BlockSpec for an operand whose block index never changes."""
    idx = lambda i, _n=len(shape): (0,) * _n
    if single_buffer:
        return pl.BlockSpec(shape, idx, pipeline_mode=pl.Buffered(1))
    return pl.BlockSpec(shape, idx)


def _decoder_conv_kernel(
    xp_ref,          # (H, N)       f32  lane-packed conv_input (N = Bb*T)
    tidx_ref,        # (1, N)       i32  time-within-batch index per lane
    emb_ref,         # (Bb, T, E)   cdt  embedded (native layout)
    encv_ref,        # (Bb, S, E)   cdt  encoder_conved (native layout)
    encc_ref,        # (Bb, S, E)   cdt  encoder_combined (native layout)
    ws_ref,          # (2H, K*H)    cdt  stacked conv weight
    wh2e_ref,        # (E, H)       cdt  hid2emb weight
    we2h_ref,        # (H, E)       cdt  emb2hid weight
    bias_col_ref,    # (3H, 1)      f32  [b_conv (2H); b_e2h (H)]
    bh2e_ref,        # (1, E)       f32  hid2emb bias row
    out_conved_ref,  # (H, N)       f32  lane-packed decoder output
    out_attn_ref,    # (Bb, S, T)   f32  attention.transpose(1,2), native layout
    *,
    kernel_size: int,
    hid_dim: int,
    emb_dim: int,
    tgt_len: int,
    batch_block: int,
    pad_token: float,
    use_bf16: bool,
):
    K, H, E, T, Bb = kernel_size, hid_dim, emb_dim, tgt_len, batch_block
    N = Bb * T
    f32 = jnp.float32
    cdt = jnp.bfloat16 if use_bf16 else jnp.float32

    xp = xp_ref[...]                                            # (H, N) f32
    t_idx = tidx_ref[...]                                       # (1, N) i32
    b_conv = bias_col_ref[: 2 * H, :]                           # (2H, 1)
    b_e2h = bias_col_ref[2 * H:, :]                             # (H, 1)

    # ---- in-kernel im2col: tap k = input shifted right by s = K-1-k within each
    #      batch segment; positions t < s read the causal pad (pad_token). ----
    taps = []
    for k in range(K):
        s = K - 1 - k
        if s == 0:
            taps.append(xp)                                     # last tap == conv_input
        else:
            shifted = jnp.concatenate(
                [jnp.full((H, s), pad_token, f32), xp[:, : N - s]], axis=1)
            taps.append(jnp.where(t_idx >= s, shifted, jnp.float32(pad_token)))
    xs = jnp.concatenate(taps, axis=0) if K > 1 else taps[0]    # (K*H, N)

    # ---- causal Conv1d (H -> 2H): single fused MXU matmul over K*H ----
    conved = lax.dot_general(
        ws_ref[...], xs.astype(cdt),
        (((1,), (0,)), ((), ())),
        preferred_element_type=f32) + b_conv                    # (2H, N)

    # ---- GLU along the channel (sublane) axis ----
    glu = conved[:H, :] * jax.nn.sigmoid(conved[H:, :])         # (H, N) f32
    glu_c = glu.astype(cdt)

    # ---- attention: hid -> emb, row-major (N, E) result ----
    conved_emb = lax.dot_general(
        glu_c, wh2e_ref[...],
        (((0,), (1,)), ((), ())),
        preferred_element_type=f32) + bh2e_ref[...]             # (N, E)

    # combined with the token embeddings (batched view; cheap when T % 8 == 0)
    combined = (conved_emb.reshape(Bb, T, E) + emb_ref[...].astype(f32)) * SCALE
    cmb_c = combined.astype(cdt)                                # (Bb, T, E)

    # ---- batched energy / softmax / attend (no Python unroll over batch) ----
    energy = jnp.einsum("bse,bte->bst", encv_ref[...], cmb_c,
                        preferred_element_type=f32)             # (Bb, S, T)
    m = jnp.max(energy, axis=1, keepdims=True)
    e = jnp.exp(energy - m)
    den = jnp.sum(e, axis=1, keepdims=True)
    if use_bf16:
        attn = e * pl.reciprocal(den, approx=True)              # EUP reciprocal (rows sum ~1)
    else:
        attn = e / den                                          # exact for f32 validation

    attended = jnp.einsum("bst,bse->bte", attn.astype(cdt), encc_ref[...],
                          preferred_element_type=f32)           # (Bb, T, E)

    # ---- emb -> hid over the whole packed slab ----
    attended_hid = lax.dot_general(
        we2h_ref[...], attended.reshape(N, E).astype(cdt),
        (((1,), (1,)), ((), ())),
        preferred_element_type=f32) + b_e2h                     # (H, N)

    # ---- fused residual epilogue: ((glu+ah)*s + x)*s == 0.5*(glu+ah) + s*x ----
    out = (glu + attended_hid) * 0.5 + xp * SCALE               # (H, N)

    out_conved_ref[...] = out.astype(out_conved_ref.dtype)      # lane-dense packed store
    out_attn_ref[...] = attn.astype(out_attn_ref.dtype)         # native (Bb,S,T) store


def decoder_conv_forward(conv_input, embedded, encoder_conved, encoder_combined,
                         params, kernel_size=3, pad_token=0.0, use_bf16=True,
                         batch_block=None, target_lanes=1024,
                         vmem_budget_bytes=48 * 1024 * 1024):
    """Pallas implementation of DecoderConv.forward (eval mode).

    conv_input:        (B, H, T) f32
    embedded:          (B, T, E) f32
    encoder_conved:    (B, S, E) f32
    encoder_combined:  (B, S, E) f32
    returns: conved (B, H, T), attention.transpose(1,2) (B, S, T)
    """
    B, H, T = conv_input.shape
    _, _, E = embedded.shape
    _, S, _ = encoder_conved.shape
    K = kernel_size
    f32 = jnp.float32
    cdt = jnp.bfloat16 if use_bf16 else f32

    if batch_block is None:
        tl = int(target_lanes)
        batch_block = _pick_batch_block(B, T, tl)
        # shrink the block until the rough VMEM estimate fits the budget
        while (batch_block < B and tl > 128 and
               _vmem_bytes_estimate(batch_block, T, S, E, H, K, use_bf16) > vmem_budget_bytes):
            tl //= 2
            batch_block = _pick_batch_block(B, T, tl)
    else:
        if B % batch_block != 0:
            raise ValueError(f"batch_block={batch_block} must divide B={B}")
        if batch_block != B and (batch_block * T) % 128 != 0:
            raise ValueError("batch_block*T must be a multiple of 128 (or batch_block == B)")

    Bb = batch_block
    nb = B // Bb
    N = Bb * T

    # ---- wrapper glue (cheap, no K-fold duplication) ----
    xp = conv_input.transpose(1, 0, 2).reshape(H, B * T).astype(f32)       # (H, B*T)
    t_idx = jnp.tile(jnp.arange(T, dtype=jnp.int32), (B,)).reshape(1, B * T)
    emb = embedded.astype(cdt)
    encv = encoder_conved.astype(cdt)
    encc = encoder_combined.astype(cdt)
    # stacked conv weight: ws[o, k*H + h] = w_conv[o, h, k]
    ws = jnp.transpose(params["w_conv"], (0, 2, 1)).reshape(2 * H, K * H).astype(cdt)
    w_h2e = params["w_h2e"].astype(cdt)                                    # (E, H)
    w_e2h = params["w_e2h"].astype(cdt)                                    # (H, E)
    bias_col = jnp.concatenate(
        [params["b_conv"], params["b_e2h"]]).reshape(3 * H, 1).astype(f32)
    bh2e_row = params["b_h2e"].reshape(1, E).astype(f32)

    kernel = functools.partial(
        _decoder_conv_kernel, kernel_size=K, hid_dim=H, emb_dim=E,
        tgt_len=T, batch_block=Bb, pad_token=float(pad_token), use_bf16=use_bf16)

    operands = (xp, t_idx, emb, encv, encc, ws, w_h2e, w_e2h, bias_col, bh2e_row)

    def _build(single_buffer_weights):
        wspec = functools.partial(_const_spec, single_buffer=single_buffer_weights)
        in_specs = [
            pl.BlockSpec((H, N), lambda i: (0, i)),        # packed conv_input
            pl.BlockSpec((1, N), lambda i: (0, i)),        # per-lane time index
            pl.BlockSpec((Bb, T, E), lambda i: (i, 0, 0)), # embedded
            pl.BlockSpec((Bb, S, E), lambda i: (i, 0, 0)), # encoder_conved
            pl.BlockSpec((Bb, S, E), lambda i: (i, 0, 0)), # encoder_combined
            wspec((2 * H, K * H)),                         # stacked conv weight
            wspec((E, H)),                                 # hid2emb W
            wspec((H, E)),                                 # emb2hid W
            wspec((3 * H, 1)),                             # packed column biases
            wspec((1, E)),                                 # hid2emb bias row
        ]
        out_specs = (
            pl.BlockSpec((H, N), lambda i: (0, i)),        # packed conved
            pl.BlockSpec((Bb, S, T), lambda i: (i, 0, 0)), # attention^T, native layout
        )
        out_shapes = (
            jax.ShapeDtypeStruct((H, B * T), f32),
            jax.ShapeDtypeStruct((B, S, T), f32),
        )
        return pl.pallas_call(
            kernel,
            out_shape=out_shapes,
            grid=(nb,),
            in_specs=in_specs,
            out_specs=out_specs,
            compiler_params=pltpu.CompilerParams(
                dimension_semantics=("parallel",),          # batch blocks are independent
                vmem_limit_bytes=int(vmem_budget_bytes)),
        )

    try:
        conved_packed, attn_t = _build(True)(*operands)
    except Exception:
        # pl.Buffered(1) not supported by this jax build -> default double buffering
        conved_packed, attn_t = _build(False)(*operands)

    # unpack the lane-packed conved slab back to (B, H, T); attention is already native
    conved = conved_packed.reshape(H, B, T).transpose(1, 0, 2)
    return conved, attn_t


def decoder_conv_reference(conv_input, embedded, encoder_conved, encoder_combined,
                           params, kernel_size=3, pad_token=0.0):
    """Pure-JAX mirror of the PyTorch forward (eval mode)."""
    B, H, T = conv_input.shape
    K = kernel_size
    padding = jnp.full((B, H, K - 1), pad_token, conv_input.dtype)
    padded = jnp.concatenate([padding, conv_input], axis=2)
    conved = lax.conv_general_dilated(
        padded, params["w_conv"], window_strides=(1,), padding="VALID",
        dimension_numbers=("NCH", "OIH", "NCH")) + params["b_conv"][None, :, None]
    a, g = conved[:, :H, :], conved[:, H:, :]
    glu = a * jax.nn.sigmoid(g)                                          # (B,H,T)
    conved_emb = jnp.einsum("bht,eh->bte", glu, params["w_h2e"]) + params["b_h2e"]
    combined = (conved_emb + embedded) * SCALE                           # (B,T,E)
    energy = jnp.einsum("bte,bse->bts", combined, encoder_conved)        # (B,T,S)
    attn = jax.nn.softmax(energy, axis=2)
    attended = jnp.einsum("bts,bse->bte", attn, encoder_combined)
    attended_hid = jnp.einsum("bte,he->bth", attended, params["w_e2h"]) + params["b_e2h"]
    attended_combined = (glu + jnp.transpose(attended_hid, (0, 2, 1))) * SCALE
    out = (attended_combined + conv_input) * SCALE
    return out, jnp.transpose(attn, (0, 2, 1))


if __name__ == "__main__":
    f32 = jnp.float32

    def make_params(key, H, E, K):
        ks = jax.random.split(key, 6)
        return {
            "w_conv": 0.1 * jax.random.normal(ks[0], (2 * H, H, K), f32),  # Conv1d(H, 2H, K)
            "b_conv": 0.1 * jax.random.normal(ks[1], (2 * H,), f32),
            "w_h2e": 0.1 * jax.random.normal(ks[2], (E, H), f32),          # Linear(H, E)
            "b_h2e": 0.1 * jax.random.normal(ks[3], (E,), f32),
            "w_e2h": 0.1 * jax.random.normal(ks[4], (H, E), f32),          # Linear(E, H)
            "b_e2h": 0.1 * jax.random.normal(ks[5], (H,), f32),
        }

    def make_inputs(key, B, H, E, T, S):
        ks = jax.random.split(key, 4)
        return (jax.random.normal(ks[0], (B, H, T), f32),
                jax.random.normal(ks[1], (B, T, E), f32),
                jax.random.normal(ks[2], (B, S, E), f32),
                jax.random.normal(ks[3], (B, S, E), f32))

    key = jax.random.PRNGKey(0)
    kp1, ki1, kp2, ki2 = jax.random.split(key, 4)

    # ---- test 1: small shapes (batch=2, hidden=32, emb=32, tgt=8, src=10, K=3) ----
    B, H, E, T, S, K = 2, 32, 32, 8, 10, 3
    params = make_params(kp1, H, E, K)
    conv_input, embedded, encv, encc = make_inputs(ki1, B, H, E, T, S)
    ref_c, ref_a = decoder_conv_reference(conv_input, embedded, encv, encc,
                                          params, kernel_size=K)

    # exact-math path (f32 MXU operands): tight correctness check
    c32, a32 = jax.block_until_ready(decoder_conv_forward(
        conv_input, embedded, encv, encc, params, kernel_size=K, use_bf16=False))
    np.testing.assert_allclose(np.asarray(c32), np.asarray(ref_c), rtol=1e-4, atol=1e-4)
    np.testing.assert_allclose(np.asarray(a32), np.asarray(ref_a), rtol=1e-4, atol=1e-4)

    # default fast path (bf16 MXU operands, f32 accumulation): loose check
    cbf, abf = jax.block_until_ready(decoder_conv_forward(
        conv_input, embedded, encv, encc, params, kernel_size=K, use_bf16=True))
    np.testing.assert_allclose(np.asarray(cbf), np.asarray(ref_c), rtol=1e-1, atol=5e-2)
    np.testing.assert_allclose(np.asarray(abf), np.asarray(ref_a), rtol=1e-1, atol=5e-2)

    # ---- test 2: multi-step grid (B=16, T=16 -> Bb=8, nb=2): exercises the
    #      128-aligned lane packing, batch-boundary shift masking, and the
    #      per-step output index maps. f32 exact path. ----
    B2, H2, E2, T2, S2 = 16, 32, 32, 16, 24
    params2 = make_params(kp2, H2, E2, K)
    ci2, em2, ev2, ec2 = make_inputs(ki2, B2, H2, E2, T2, S2)
    ref_c2, ref_a2 = decoder_conv_reference(ci2, em2, ev2, ec2, params2, kernel_size=K)
    c2, a2 = jax.block_until_ready(decoder_conv_forward(
        ci2, em2, ev2, ec2, params2, kernel_size=K, use_bf16=False))
    np.testing.assert_allclose(np.asarray(c2), np.asarray(ref_c2), rtol=1e-4, atol=1e-4)
    np.testing.assert_allclose(np.asarray(a2), np.asarray(ref_a2), rtol=1e-4, atol=1e-4)

    print("KERNEL_OK")
</pallas_src>

<mosaic_0001>
module attributes {stable_mosaic.version = 11 : i64} {
  func.func @_decoder_conv_kernel(%arg0: i32, %arg1: memref<32x16xf32, #tpu.memory_space<vmem>>, %arg2: memref<1x16xi32, #tpu.memory_space<vmem>>, %arg3: memref<2x8x32xf32, #tpu.memory_space<vmem>>, %arg4: memref<2x10x32xf32, #tpu.memory_space<vmem>>, %arg5: memref<2x10x32xf32, #tpu.memory_space<vmem>>, %arg6: memref<64x96xf32, #tpu.memory_space<vmem>>, %arg7: memref<32x32xf32, #tpu.memory_space<vmem>>, %arg8: memref<32x32xf32, #tpu.memory_space<vmem>>, %arg9: memref<96x1xf32, #tpu.memory_space<vmem>>, %arg10: memref<1x32xf32, #tpu.memory_space<vmem>>, %arg11: memref<32x16xf32, #tpu.memory_space<vmem>>, %arg12: memref<2x10x8xf32, #tpu.memory_space<vmem>>) attributes {dimension_semantics = [#tpu.dimension_semantics<parallel>], iteration_bounds = array<i64: 1>, scalar_prefetch = 0 : i64, scratch_operands = 0 : i64, tpu.core_type = #tpu.core_type<tc>, window_params = [{transform_indices = @transform_0, window_bounds = array<i64: 32, 16>}, {transform_indices = @transform_1, window_bounds = array<i64: 1, 16>}, {transform_indices = @transform_2, window_bounds = array<i64: 2, 8, 32>}, {transform_indices = @transform_3, window_bounds = array<i64: 2, 10, 32>}, {transform_indices = @transform_4, window_bounds = array<i64: 2, 10, 32>}, {pipeline_mode = #tpu.pipeline_mode<synchronous>, transform_indices = @transform_5, window_bounds = array<i64: 64, 96>}, {pipeline_mode = #tpu.pipeline_mode<synchronous>, transform_indices = @transform_6, window_bounds = array<i64: 32, 32>}, {pipeline_mode = #tpu.pipeline_mode<synchronous>, transform_indices = @transform_7, window_bounds = array<i64: 32, 32>}, {pipeline_mode = #tpu.pipeline_mode<synchronous>, transform_indices = @transform_8, window_bounds = array<i64: 96, 1>}, {pipeline_mode = #tpu.pipeline_mode<synchronous>, transform_indices = @transform_9, window_bounds = array<i64: 1, 32>}, {transform_indices = @transform_10, window_bounds = array<i64: 32, 16>}, {transform_indices = @transform_11, window_bounds = array<i64: 2, 10, 8>}]} {
    %c0 = arith.constant 0 : index
    %c0_0 = arith.constant 0 : index
    %0 = vector.load %arg1[%c0, %c0_0] : memref<32x16xf32, #tpu.memory_space<vmem>>, vector<32x16xf32>
    %c0_1 = arith.constant 0 : index
    %c0_2 = arith.constant 0 : index
    %1 = vector.load %arg2[%c0_1, %c0_2] : memref<1x16xi32, #tpu.memory_space<vmem>>, vector<1x16xi32>
    %c0_3 = arith.constant 0 : index
    %c0_4 = arith.constant 0 : index
    %2 = vector.load %arg9[%c0_3, %c0_4] : memref<96x1xf32, #tpu.memory_space<vmem>>, vector<64x1xf32>
    %c64 = arith.constant 64 : index
    %c0_5 = arith.constant 0 : index
    %3 = vector.load %arg9[%c64, %c0_5] : memref<96x1xf32, #tpu.memory_space<vmem>>, vector<32x1xf32>
    %cst = arith.constant 0.000000e+00 : f32
    %4 = vector.broadcast %cst : f32 to vector<32x2xf32>
    %5 = vector.extract_strided_slice %0 {offsets = [0, 0], sizes = [32, 14], strides = [1, 1]} : vector<32x16xf32> to vector<32x14xf32>
    %6 = tpu.concatenate %4, %5 in 1 : vector<32x2xf32>, vector<32x14xf32> -> vector<32x16xf32>
    %c2_i32 = arith.constant 2 : i32
    %7 = vector.broadcast %c2_i32 : i32 to vector<1x16xi32>
    %8 = arith.cmpi sge, %1, %7 : vector<1x16xi32>
    %cst_6 = arith.constant 0.000000e+00 : f32
    %9 = vector.shape_cast %8 : vector<1x16xi1> to vector<1x16xi1>
    %10 = vector.broadcast %9 : vector<1x16xi1> to vector<32x16xi1>
    %11 = vector.broadcast %cst_6 : f32 to vector<32x16xf32>
    %12 = arith.select %10, %6, %11 : vector<32x16xi1>, vector<32x16xf32>
    %cst_7 = arith.constant 0.000000e+00 : f32
    %13 = vector.broadcast %cst_7 : f32 to vector<32x1xf32>
    %14 = vector.extract_strided_slice %0 {offsets = [0, 0], sizes = [32, 15], strides = [1, 1]} : vector<32x16xf32> to vector<32x15xf32>
    %15 = tpu.concatenate %13, %14 in 1 : vector<32x1xf32>, vector<32x15xf32> -> vector<32x16xf32>
    %c1_i32 = arith.constant 1 : i32
    %16 = vector.broadcast %c1_i32 : i32 to vector<1x16xi32>
    %17 = arith.cmpi sge, %1, %16 : vector<1x16xi32>
    %cst_8 = arith.constant 0.000000e+00 : f32
    %18 = vector.shape_cast %17 : vector<1x16xi1> to vector<1x16xi1>
    %19 = vector.broadcast %18 : vector<1x16xi1> to vector<32x16xi1>
    %20 = vector.broadcast %cst_8 : f32 to vector<32x16xf32>
    %21 = arith.select %19, %15, %20 : vector<32x16xi1>, vector<32x16xf32>
    %22 = tpu.concatenate %12, %21, %0 in 0 : vector<32x16xf32>, vector<32x16xf32>, vector<32x16xf32> -> vector<96x16xf32>
    %c0_9 = arith.constant 0 : index
    %c0_10 = arith.constant 0 : index
    %23 = vector.load %arg6[%c0_9, %c0_10] : memref<64x96xf32, #tpu.memory_space<vmem>>, vector<64x96xf32>
    %cst_11 = arith.constant dense<0.000000e+00> : vector<64x16xf32>
    %24 = tpu.matmul %23, %22, %cst_11 {dimension_numbers = #tpu.dot_dimension_numbers<[1], [0], [0], [1], [0, 0, 1, 1], [], []>} : vector<64x96xf32>, vector<96x16xf32>, vector<64x16xf32> -> vector<64x16xf32>
    %25 = vector.broadcast %2 : vector<64x1xf32> to vector<64x16xf32>
    %26 = arith.addf %24, %25 : vector<64x16xf32>
    %27 = vector.extract_strided_slice %26 {offsets = [0, 0], sizes = [32, 16], strides = [1, 1]} : vector<64x16xf32> to vector<32x16xf32>
    %28 = vector.extract_strided_slice %26 {offsets = [32, 0], sizes = [32, 16], strides = [1, 1]} : vector<64x16xf32> to vector<32x16xf32>
    %29 = arith.negf %28 : vector<32x16xf32>
    %30 = math.exp %29 : vector<32x16xf32>
    %cst_12 = arith.constant 1.000000e+00 : f32
    %31 = vector.broadcast %cst_12 : f32 to vector<32x16xf32>
    %32 = arith.addf %31, %30 : vector<32x16xf32>
    %33 = arith.divf %31, %32 : vector<32x16xf32>
    %34 = arith.mulf %27, %33 : vector<32x16xf32>
    %c0_13 = arith.constant 0 : index
    %c0_14 = arith.constant 0 : index
    %35 = vector.load %arg7[%c0_13, %c0_14] : memref<32x32xf32, #tpu.memory_space<vmem>>, vector<32x32xf32>
    %cst_15 = arith.constant dense<0.000000e+00> : vector<16x32xf32>
    %36 = tpu.matmul %34, %35, %cst_15 {dimension_numbers = #tpu.dot_dimension_numbers<[0], [1], [1], [0], [0, 1, 1, 0], [], []>} : vector<32x16xf32>, vector<32x32xf32>, vector<16x32xf32> -> vector<16x32xf32>
    %c0_16 = arith.constant 0 : index
    %c0_17 = arith.constant 0 : index
    %37 = vector.load %arg10[%c0_16, %c0_17] : memref<1x32xf32, #tpu.memory_space<vmem>>, vector<1x32xf32>
    %38 = vector.broadcast %37 : vector<1x32xf32> to vector<16x32xf32>
    %39 = arith.addf %36, %38 : vector<16x32xf32>
    %40 = vector.shape_cast %39 : vector<16x32xf32> to vector<2x8x32xf32>
    %c0_18 = arith.constant 0 : index
    %c0_19 = arith.constant 0 : index
    %c0_20 = arith.constant 0 : index
    %41 = vector.load %arg3[%c0_18, %c0_19, %c0_20] : memref<2x8x32xf32, #tpu.memory_space<vmem>>, vector<2x8x32xf32>
    %42 = arith.addf %40, %41 : vector<2x8x32xf32>
    %cst_21 = arith.constant 0.707106769 : f32
    %43 = vector.broadcast %cst_21 : f32 to vector<2x8x32xf32>
    %44 = arith.mulf %42, %43 : vector<2x8x32xf32>
    %c0_22 = arith.constant 0 : index
    %c0_23 = arith.constant 0 : index
    %c0_24 = arith.constant 0 : index
    %45 = vector.load %arg4[%c0_22, %c0_23, %c0_24] : memref<2x10x32xf32, #tpu.memory_space<vmem>>, vector<2x10x32xf32>
    "tpu.trace_start"() <{level = 10 : i32, message = "bse,bte->bst"}> : () -> ()
    %cst_25 = arith.constant dense<0.000000e+00> : vector<2x10x8xf32>
    %46 = tpu.matmul %45, %44, %cst_25 {dimension_numbers = #tpu.dot_dimension_numbers<[2], [2], [1], [1], [0, 0, 0, 1, 1, 1], [0], [0]>} : vector<2x10x32xf32>, vector<2x8x32xf32>, vector<2x10x8xf32> -> vector<2x10x8xf32>
    "tpu.trace_stop"() : () -> ()
    %cst_26 = arith.constant dense<0xFF800000> : vector<2x8xf32>
    %47 = vector.multi_reduction <maximumf>, %46, %cst_26 [1] : vector<2x10x8xf32> to vector<2x8xf32>
    %48 = vector.shape_cast %47 : vector<2x8xf32> to vector<2x1x8xf32>
    %49 = vector.broadcast %48 : vector<2x1x8xf32> to vector<2x10x8xf32>
    %50 = arith.subf %46, %49 : vector<2x10x8xf32>
    %51 = math.exp %50 : vector<2x10x8xf32>
    %cst_27 = arith.constant dense<0.000000e+00> : vector<2x8xf32>
    %52 = vector.multi_reduction <add>, %51, %cst_27 [1] : vector<2x10x8xf32> to vector<2x8xf32>
    %53 = vector.shape_cast %52 : vector<2x8xf32> to vector<2x1x8xf32>
    %54 = vector.broadcast %53 : vector<2x1x8xf32> to vector<2x10x8xf32>
    %55 = arith.divf %51, %54 : vector<2x10x8xf32>
    %c0_28 = arith.constant 0 : index
    %c0_29 = arith.constant 0 : index
    %c0_30 = arith.constant 0 : index
    %56 = vector.load %arg5[%c0_28, %c0_29, %c0_30] : memref<2x10x32xf32, #tpu.memory_space<vmem>>, vector<2x10x32xf32>
    "tpu.trace_start"() <{level = 10 : i32, message = "bst,bse->bte"}> : () -> ()
    %cst_31 = arith.constant dense<0.000000e+00> : vector<2x8x32xf32>
    %57 = tpu.matmul %55, %56, %cst_31 {dimension_numbers = #tpu.dot_dimension_numbers<[1], [1], [2], [2], [0, 0, 0, 2, 1, 2], [0], [0]>} : vector<2x10x8xf32>, vector<2x10x32xf32>, vector<2x8x32xf32> -> vector<2x8x32xf32>
    "tpu.trace_stop"() : () -> ()
    %c0_32 = arith.constant 0 : index
    %c0_33 = arith.constant 0 : index
    %58 = vector.load %arg8[%c0_32, %c0_33] : memref<32x32xf32, #tpu.memory_space<vmem>>, vector<32x32xf32>
    %59 = vector.shape_cast %57 : vector<2x8x32xf32> to vector<16x32xf32>
    %cst_34 = arith.constant dense<0.000000e+00> : vector<32x16xf32>
    %60 = tpu.matmul %58, %59, %cst_34 {dimension_numbers = #tpu.dot_dimension_numbers<[1], [1], [0], [0], [0, 0, 1, 0], [], []>} : vector<32x32xf32>, vector<16x32xf32>, vector<32x16xf32> -> vector<32x16xf32>
    %61 = vector.broadcast %3 : vector<32x1xf32> to vector<32x16xf32>
    %62 = arith.addf %60, %61 : vector<32x16xf32>
    %63 = arith.addf %34, %62 : vector<32x16xf32>
    %cst_35 = arith.constant 5.000000e-01 : f32
    %64 = vector.broadcast %cst_35 : f32 to vector<32x16xf32>
    %65 = arith.mulf %63, %64 : vector<32x16xf32>
    %cst_36 = arith.constant 0.707106769 : f32
    %66 = vector.broadcast %cst_36 : f32 to vector<32x16xf32>
    %67 = arith.mulf %0, %66 : vector<32x16xf32>
    %68 = arith.addf %65, %67 : vector<32x16xf32>
    %c0_37 = arith.constant 0 : index
    %c0_38 = arith.constant 0 : index
    %69 = vector.load %arg11[%c0_37, %c0_38] : memref<32x16xf32, #tpu.memory_space<vmem>>, vector<32x16xf32>
    tpu.vector_store %arg11[%c0_37, %c0_38], %68 {strides = array<i32>} : memref<32x16xf32, #tpu.memory_space<vmem>>, vector<32x16xf32>,
    %c0_39 = arith.constant 0 : index
    %c0_40 = arith.constant 0 : index
    %c0_41 = arith.constant 0 : index
    %70 = vector.load %arg12[%c0_39, %c0_40, %c0_41] : memref<2x10x8xf32, #tpu.memory_space<vmem>>, vector<2x10x8xf32>
    tpu.vector_store %arg12[%c0_39, %c0_40, %c0_41], %55 {strides = array<i32>} : memref<2x10x8xf32, #tpu.memory_space<vmem>>, vector<2x10x8xf32>,
    return
  }
  func.func @transform_0(%arg0: i32) -> (i32, i32) {
    %c0_i32 = arith.constant 0 : i32
    %c0_i32_0 = arith.constant 0 : i32
    return %c0_i32, %arg0 : i32, i32
  }
  func.func @transform_1(%arg0: i32) -> (i32, i32) {
    %c0_i32 = arith.constant 0 : i32
    %c0_i32_0 = arith.constant 0 : i32
    return %c0_i32, %arg0 : i32, i32
  }
  func.func @transform_2(%arg0: i32) -> (i32, i32, i32) {
    %c0_i32 = arith.constant 0 : i32
    %c0_i32_0 = arith.constant 0 : i32
    %c0_i32_1 = arith.constant 0 : i32
    return %arg0, %c0_i32, %c0_i32_0 : i32, i32, i32
  }
  func.func @transform_3(%arg0: i32) -> (i32, i32, i32) {
    %c0_i32 = arith.constant 0 : i32
    %c0_i32_0 = arith.constant 0 : i32
    %c0_i32_1 = arith.constant 0 : i32
    return %arg0, %c0_i32, %c0_i32_0 : i32, i32, i32
  }
  func.func @transform_4(%arg0: i32) -> (i32, i32, i32) {
    %c0_i32 = arith.constant 0 : i32
    %c0_i32_0 = arith.constant 0 : i32
    %c0_i32_1 = arith.constant 0 : i32
    return %arg0, %c0_i32, %c0_i32_0 : i32, i32, i32
  }
  func.func @transform_5(%arg0: i32) -> (i32, i32) {
    %c0_i32 = arith.constant 0 : i32
    %c0_i32_0 = arith.constant 0 : i32
    %c0_i32_1 = arith.constant 0 : i32
    return %c0_i32, %c0_i32_0 : i32, i32
  }
  func.func @transform_6(%arg0: i32) -> (i32, i32) {
    %c0_i32 = arith.constant 0 : i32
    %c0_i32_0 = arith.constant 0 : i32
    %c0_i32_1 = arith.constant 0 : i32
    return %c0_i32, %c0_i32_0 : i32, i32
  }
  func.func @transform_7(%arg0: i32) -> (i32, i32) {
    %c0_i32 = arith.constant 0 : i32
    %c0_i32_0 = arith.constant 0 : i32
    %c0_i32_1 = arith.constant 0 : i32
    return %c0_i32, %c0_i32_0 : i32, i32
  }
  func.func @transform_8(%arg0: i32) -> (i32, i32) {
    %c0_i32 = arith.constant 0 : i32
    %c0_i32_0 = arith.constant 0 : i32
    %c0_i32_1 = arith.constant 0 : i32
    return %c0_i32, %c0_i32_0 : i32, i32
  }
  func.func @transform_9(%arg0: i32) -> (i32, i32) {
    %c0_i32 = arith.constant 0 : i32
    %c0_i32_0 = arith.constant 0 : i32
    %c0_i32_1 = arith.constant 0 : i32
    return %c0_i32, %c0_i32_0 : i32, i32
  }
  func.func @transform_10(%arg0: i32) -> (i32, i32) {
    %c0_i32 = arith.constant 0 : i32
    %c0_i32_0 = arith.constant 0 : i32
    return %c0_i32, %arg0 : i32, i32
  }
  func.func @transform_11(%arg0: i32) -> (i32, i32, i32) {
    %c0_i32 = arith.constant 0 : i32
    %c0_i32_0 = arith.constant 0 : i32
    %c0_i32_1 = arith.constant 0 : i32
    return %arg0, %c0_i32, %c0_i32_0 : i32, i32, i32
  }
}

module attributes {stable_mosaic.version = 11 : i64} {
  func.func @_decoder_conv_kernel(%arg0: i32, %arg1: memref<32x16xf32, #tpu.memory_space<vmem>>, %arg2: memref<1x16xi32, #tpu.memory_space<vmem>>, %arg3: memref<2x8x32xf32, #tpu.memory_space<vmem>>, %arg4: memref<2x10x32xf32, #tpu.memory_space<vmem>>, %arg5: memref<2x10x32xf32, #tpu.memory_space<vmem>>, %arg6: memref<64x96xf32, #tpu.memory_space<vmem>>, %arg7: memref<32x32xf32, #tpu.memory_space<vmem>>, %arg8: memref<32x32xf32, #tpu.memory_space<vmem>>, %arg9: memref<96x1xf32, #tpu.memory_space<vmem>>, %arg10: memref<1x32xf32, #tpu.memory_space<vmem>>, %arg11: memref<32x16xf32, #tpu.memory_space<vmem>>, %arg12: memref<2x10x8xf32, #tpu.memory_space<vmem>>) attributes {dimension_semantics = [#tpu.dimension_semantics<parallel>], iteration_bounds = array<i64: 1>, scalar_prefetch = 0 : i64, scratch_operands = 0 : i64, tpu.core_type = #tpu.core_type<tc>, window_params = [{transform_indices = @transform_0, window_bounds = array<i64: 32, 16>}, {transform_indices = @transform_1, window_bounds = array<i64: 1, 16>}, {transform_indices = @transform_2, window_bounds = array<i64: 2, 8, 32>}, {transform_indices = @transform_3, window_bounds = array<i64: 2, 10, 32>}, {transform_indices = @transform_4, window_bounds = array<i64: 2, 10, 32>}, {pipeline_mode = #tpu.pipeline_mode<synchronous>, transform_indices = @transform_5, window_bounds = array<i64: 64, 96>}, {pipeline_mode = #tpu.pipeline_mode<synchronous>, transform_indices = @transform_6, window_bounds = array<i64: 32, 32>}, {pipeline_mode = #tpu.pipeline_mode<synchronous>, transform_indices = @transform_7, window_bounds = array<i64: 32, 32>}, {pipeline_mode = #tpu.pipeline_mode<synchronous>, transform_indices = @transform_8, window_bounds = array<i64: 96, 1>}, {pipeline_mode = #tpu.pipeline_mode<synchronous>, transform_indices = @transform_9, window_bounds = array<i64: 1, 32>}, {transform_indices = @transform_10, window_bounds = array<i64: 32, 16>}, {transform_indices = @transform_11, window_bounds = array<i64: 2, 10, 8>}]} {
    %c0 = arith.constant 0 : index
    %c0_0 = arith.constant 0 : index
    %0 = vector.load %arg1[%c0, %c0_0] : memref<32x16xf32, #tpu.memory_space<vmem>>, vector<32x16xf32>
    %c0_1 = arith.constant 0 : index
    %c0_2 = arith.constant 0 : index
    %1 = vector.load %arg2[%c0_1, %c0_2] : memref<1x16xi32, #tpu.memory_space<vmem>>, vector<1x16xi32>
    %c0_3 = arith.constant 0 : index
    %c0_4 = arith.constant 0 : index
    %2 = vector.load %arg9[%c0_3, %c0_4] : memref<96x1xf32, #tpu.memory_space<vmem>>, vector<64x1xf32>
    %c64 = arith.constant 64 : index
    %c0_5 = arith.constant 0 : index
    %3 = vector.load %arg9[%c64, %c0_5] : memref<96x1xf32, #tpu.memory_space<vmem>>, vector<32x1xf32>
    %cst = arith.constant 0.000000e+00 : f32
    %4 = vector.broadcast %cst : f32 to vector<32x2xf32>
    %5 = vector.extract_strided_slice %0 {offsets = [0, 0], sizes = [32, 14], strides = [1, 1]} : vector<32x16xf32> to vector<32x14xf32>
    %6 = tpu.concatenate %4, %5 in 1 : vector<32x2xf32>, vector<32x14xf32> -> vector<32x16xf32>
    %c2_i32 = arith.constant 2 : i32
    %7 = vector.broadcast %c2_i32 : i32 to vector<1x16xi32>
    %8 = arith.cmpi sge, %1, %7 : vector<1x16xi32>
    %cst_6 = arith.constant 0.000000e+00 : f32
    %9 = vector.shape_cast %8 : vector<1x16xi1> to vector<1x16xi1>
    %10 = vector.broadcast %9 : vector<1x16xi1> to vector<32x16xi1>
    %11 = vector.broadcast %cst_6 : f32 to vector<32x16xf32>
    %12 = arith.select %10, %6, %11 : vector<32x16xi1>, vector<32x16xf32>
    %cst_7 = arith.constant 0.000000e+00 : f32
    %13 = vector.broadcast %cst_7 : f32 to vector<32x1xf32>
    %14 = vector.extract_strided_slice %0 {offsets = [0, 0], sizes = [32, 15], strides = [1, 1]} : vector<32x16xf32> to vector<32x15xf32>
    %15 = tpu.concatenate %13, %14 in 1 : vector<32x1xf32>, vector<32x15xf32> -> vector<32x16xf32>
    %c1_i32 = arith.constant 1 : i32
    %16 = vector.broadcast %c1_i32 : i32 to vector<1x16xi32>
    %17 = arith.cmpi sge, %1, %16 : vector<1x16xi32>
    %cst_8 = arith.constant 0.000000e+00 : f32
    %18 = vector.shape_cast %17 : vector<1x16xi1> to vector<1x16xi1>
    %19 = vector.broadcast %18 : vector<1x16xi1> to vector<32x16xi1>
    %20 = vector.broadcast %cst_8 : f32 to vector<32x16xf32>
    %21 = arith.select %19, %15, %20 : vector<32x16xi1>, vector<32x16xf32>
    %22 = tpu.concatenate %12, %21, %0 in 0 : vector<32x16xf32>, vector<32x16xf32>, vector<32x16xf32> -> vector<96x16xf32>
    %c0_9 = arith.constant 0 : index
    %c0_10 = arith.constant 0 : index
    %23 = vector.load %arg6[%c0_9, %c0_10] : memref<64x96xf32, #tpu.memory_space<vmem>>, vector<64x96xf32>
    %cst_11 = arith.constant dense<0.000000e+00> : vector<64x16xf32>
    %24 = tpu.matmul %23, %22, %cst_11 {dimension_numbers = #tpu.dot_dimension_numbers<[1], [0], [0], [1], [0, 0, 1, 1], [], []>} : vector<64x96xf32>, vector<96x16xf32>, vector<64x16xf32> -> vector<64x16xf32>
    %25 = vector.broadcast %2 : vector<64x1xf32> to vector<64x16xf32>
    %26 = arith.addf %24, %25 : vector<64x16xf32>
    %27 = vector.extract_strided_slice %26 {offsets = [0, 0], sizes = [32, 16], strides = [1, 1]} : vector<64x16xf32> to vector<32x16xf32>
    %28 = vector.extract_strided_slice %26 {offsets = [32, 0], sizes = [32, 16], strides = [1, 1]} : vector<64x16xf32> to vector<32x16xf32>
    %29 = arith.negf %28 : vector<32x16xf32>
    %30 = math.exp %29 : vector<32x16xf32>
    %cst_12 = arith.constant 1.000000e+00 : f32
    %31 = vector.broadcast %cst_12 : f32 to vector<32x16xf32>
    %32 = arith.addf %31, %30 : vector<32x16xf32>
    %33 = arith.divf %31, %32 : vector<32x16xf32>
    %34 = arith.mulf %27, %33 : vector<32x16xf32>
    %c0_13 = arith.constant 0 : index
    %c0_14 = arith.constant 0 : index
    %35 = vector.load %arg7[%c0_13, %c0_14] : memref<32x32xf32, #tpu.memory_space<vmem>>, vector<32x32xf32>
    %cst_15 = arith.constant dense<0.000000e+00> : vector<16x32xf32>
    %36 = tpu.matmul %34, %35, %cst_15 {dimension_numbers = #tpu.dot_dimension_numbers<[0], [1], [1], [0], [0, 1, 1, 0], [], []>} : vector<32x16xf32>, vector<32x32xf32>, vector<16x32xf32> -> vector<16x32xf32>
    %c0_16 = arith.constant 0 : index
    %c0_17 = arith.constant 0 : index
    %37 = vector.load %arg10[%c0_16, %c0_17] : memref<1x32xf32, #tpu.memory_space<vmem>>, vector<1x32xf32>
    %38 = vector.broadcast %37 : vector<1x32xf32> to vector<16x32xf32>
    %39 = arith.addf %36, %38 : vector<16x32xf32>
    %40 = vector.shape_cast %39 : vector<16x32xf32> to vector<2x8x32xf32>
    %c0_18 = arith.constant 0 : index
    %c0_19 = arith.constant 0 : index
    %c0_20 = arith.constant 0 : index
    %41 = vector.load %arg3[%c0_18, %c0_19, %c0_20] : memref<2x8x32xf32, #tpu.memory_space<vmem>>, vector<2x8x32xf32>
    %42 = arith.addf %40, %41 : vector<2x8x32xf32>
    %cst_21 = arith.constant 0.707106769 : f32
    %43 = vector.broadcast %cst_21 : f32 to vector<2x8x32xf32>
    %44 = arith.mulf %42, %43 : vector<2x8x32xf32>
    %c0_22 = arith.constant 0 : index
    %c0_23 = arith.constant 0 : index
    %c0_24 = arith.constant 0 : index
    %45 = vector.load %arg4[%c0_22, %c0_23, %c0_24] : memref<2x10x32xf32, #tpu.memory_space<vmem>>, vector<2x10x32xf32>
    "tpu.trace_start"() <{level = 10 : i32, message = "bse,bte->bst"}> : () -> ()
    %cst_25 = arith.constant dense<0.000000e+00> : vector<2x10x8xf32>
    %46 = tpu.matmul %45, %44, %cst_25 {dimension_numbers = #tpu.dot_dimension_numbers<[2], [2], [1], [1], [0, 0, 0, 1, 1, 1], [0], [0]>} : vector<2x10x32xf32>, vector<2x8x32xf32>, vector<2x10x8xf32> -> vector<2x10x8xf32>
    "tpu.trace_stop"() : () -> ()
    %cst_26 = arith.constant dense<0xFF800000> : vector<2x8xf32>
    %47 = vector.multi_reduction <maximumf>, %46, %cst_26 [1] : vector<2x10x8xf32> to vector<2x8xf32>
    %48 = vector.shape_cast %47 : vector<2x8xf32> to vector<2x1x8xf32>
    %49 = vector.broadcast %48 : vector<2x1x8xf32> to vector<2x10x8xf32>
    %50 = arith.subf %46, %49 : vector<2x10x8xf32>
    %51 = math.exp %50 : vector<2x10x8xf32>
    %cst_27 = arith.constant dense<0.000000e+00> : vector<2x8xf32>
    %52 = vector.multi_reduction <add>, %51, %cst_27 [1] : vector<2x10x8xf32> to vector<2x8xf32>
    %53 = vector.shape_cast %52 : vector<2x8xf32> to vector<2x1x8xf32>
    %54 = vector.broadcast %53 : vector<2x1x8xf32> to vector<2x10x8xf32>
    %55 = arith.divf %51, %54 : vector<2x10x8xf32>
    %c0_28 = arith.constant 0 : index
    %c0_29 = arith.constant 0 : index
    %c0_30 = arith.constant 0 : index
    %56 = vector.load %arg5[%c0_28, %c0_29, %c0_30] : memref<2x10x32xf32, #tpu.memory_space<vmem>>, vector<2x10x32xf32>
    "tpu.trace_start"() <{level = 10 : i32, message = "bst,bse->bte"}> : () -> ()
    %cst_31 = arith.constant dense<0.000000e+00> : vector<2x8x32xf32>
    %57 = tpu.matmul %55, %56, %cst_31 {dimension_numbers = #tpu.dot_dimension_numbers<[1], [1], [2], [2], [0, 0, 0, 2, 1, 2], [0], [0]>} : vector<2x10x8xf32>, vector<2x10x32xf32>, vector<2x8x32xf32> -> vector<2x8x32xf32>
    "tpu.trace_stop"() : () -> ()
    %c0_32 = arith.constant 0 : index
    %c0_33 = arith.constant 0 : index
    %58 = vector.load %arg8[%c0_32, %c0_33] : memref<32x32xf32, #tpu.memory_space<vmem>>, vector<32x32xf32>
    %59 = vector.shape_cast %57 : vector<2x8x32xf32> to vector<16x32xf32>
    %cst_34 = arith.constant dense<0.000000e+00> : vector<32x16xf32>
    %60 = tpu.matmul %58, %59, %cst_34 {dimension_numbers = #tpu.dot_dimension_numbers<[1], [1], [0], [0], [0, 0, 1, 0], [], []>} : vector<32x32xf32>, vector<16x32xf32>, vector<32x16xf32> -> vector<32x16xf32>
    %61 = vector.broadcast %3 : vector<32x1xf32> to vector<32x16xf32>
    %62 = arith.addf %60, %61 : vector<32x16xf32>
    %63 = arith.addf %34, %62 : vector<32x16xf32>
    %cst_35 = arith.constant 5.000000e-01 : f32
    %64 = vector.broadcast %cst_35 : f32 to vector<32x16xf32>
    %65 = arith.mulf %63, %64 : vector<32x16xf32>
    %cst_36 = arith.constant 0.707106769 : f32
    %66 = vector.broadcast %cst_36 : f32 to vector<32x16xf32>
    %67 = arith.mulf %0, %66 : vector<32x16xf32>
    %68 = arith.addf %65, %67 : vector<32x16xf32>
    %c0_37 = arith.constant 0 : index
    %c0_38 = arith.constant 0 : index
    %69 = vector.load %arg11[%c0_37, %c0_38] : memref<32x16xf32, #tpu.memory_space<vmem>>, vector<32x16xf32>
    tpu.vector_store %arg11[%c0_37, %c0_38], %68 {strides = array<i32>} : memref<32x16xf32, #tpu.memory_space<vmem>>, vector<32x16xf32>,
    %c0_39 = arith.constant 0 : index
    %c0_40 = arith.constant 0 : index
    %c0_41 = arith.constant 0 : index
    %70 = vector.load %arg12[%c0_39, %c0_40, %c0_41] : memref<2x10x8xf32, #tpu.memory_space<vmem>>, vector<2x10x8xf32>
    tpu.vector_store %arg12[%c0_39, %c0_40, %c0_41], %55 {strides = array<i32>} : memref<2x10x8xf32, #tpu.memory_space<vmem>>, vector<2x10x8xf32>,
    return
  }
  func.func @transform_0(%arg0: i32) -> (i32, i32) {
    %c0_i32 = arith.constant 0 : i32
    %c0_i32_0 = arith.constant 0 : i32
    return %c0_i32, %arg0 : i32, i32
  }
  func.func @transform_1(%arg0: i32) -> (i32, i32) {
    %c0_i32 = arith.constant 0 : i32
    %c0_i32_0 = arith.constant 0 : i32
    return %c0_i32, %arg0 : i32, i32
  }
  func.func @transform_2(%arg0: i32) -> (i32, i32, i32) {
    %c0_i32 = arith.constant 0 : i32
    %c0_i32_0 = arith.constant 0 : i32
    %c0_i32_1 = arith.constant 0 : i32
    return %arg0, %c0_i32, %c0_i32_0 : i32, i32, i32
  }
  func.func @transform_3(%arg0: i32) -> (i32, i32, i32) {
    %c0_i32 = arith.constant 0 : i32
    %c0_i32_0 = arith.constant 0 : i32
    %c0_i32_1 = arith.constant 0 : i32
    return %arg0, %c0_i32, %c0_i32_0 : i32, i32, i32
  }
  func.func @transform_4(%arg0: i32) -> (i32, i32, i32) {
    %c0_i32 = arith.constant 0 : i32
    %c0_i32_0 = arith.constant 0 : i32
    %c0_i32_1 = arith.constant 0 : i32
    return %arg0, %c0_i32, %c0_i32_0 : i32, i32, i32
  }
  func.func @transform_5(%arg0: i32) -> (i32, i32) {
    %c0_i32 = arith.constant 0 : i32
    %c0_i32_0 = arith.constant 0 : i32
    %c0_i32_1 = arith.constant 0 : i32
    return %c0_i32, %c0_i32_0 : i32, i32
  }
  func.func @transform_6(%arg0: i32) -> (i32, i32) {
    %c0_i32 = arith.constant 0 : i32
    %c0_i32_0 = arith.constant 0 : i32
    %c0_i32_1 = arith.constant 0 : i32
    return %c0_i32, %c0_i32_0 : i32, i32
  }
  func.func @transform_7(%arg0: i32) -> (i32, i32) {
    %c0_i32 = arith.constant 0 : i32
    %c0_i32_0 = arith.constant 0 : i32
    %c0_i32_1 = arith.constant 0 : i32
    return %c0_i32, %c0_i32_0 : i32, i32
  }
  func.func @transform_8(%arg0: i32) -> (i32, i32) {
    %c0_i32 = arith.constant 0 : i32
    %c0_i32_0 = arith.constant 0 : i32
    %c0_i32_1 = arith.constant 0 : i32
    return %c0_i32, %c0_i32_0 : i32, i32
  }
  func.func @transform_9(%arg0: i32) -> (i32, i32) {
    %c0_i32 = arith.constant 0 : i32
    %c0_i32_0 = arith.constant 0 : i32
    %c0_i32_1 = arith.constant 0 : i32
    return %c0_i32, %c0_i32_0 : i32, i32
  }
  func.func @transform_10(%arg0: i32) -> (i32, i32) {
    %c0_i32 = arith.constant 0 : i32
    %c0_i32_0 = arith.constant 0 : i32
    return %c0_i32, %arg0 : i32, i32
  }
  func.func @transform_11(%arg0: i32) -> (i32, i32, i32) {
    %c0_i32 = arith.constant 0 : i32
    %c0_i32_0 = arith.constant 0 : i32
    %c0_i32_1 = arith.constant 0 : i32
    return %arg0, %c0_i32, %c0_i32_0 : i32, i32, i32
  }
}

</mosaic_0001>

<llo_original>
// kernel: tpu_custom_call.1
$region0: #{tpu_custom_call.1}
  #allocation0 [shape = 'u32[]', space=smem, size = 0x4, offset = 0x4, fixed_abs, tag = 'smem constant byte address 0x4 - core index']
  #allocation1 [shape = 'u32[144,128]{1,0:T(1,128)}', space=vmem, size = 0x12000, scoped, tag = 'internal scratch']
  %s0 = inlined_call_operand.vmem [shape: f32[32,16], index: 0, kind: input, shape index: {}]
  %s1 = inlined_call_operand.vmem [shape: s32[1,16], index: 1, kind: input, shape index: {}]
  %s2 = inlined_call_operand.vmem [shape: f32[2,8,32], index: 2, kind: input, shape index: {}]
  %s3 = inlined_call_operand.vmem [shape: f32[2,10,32], index: 3, kind: input, shape index: {}]
  %s4 = inlined_call_operand.vmem [shape: f32[2,10,32], index: 4, kind: input, shape index: {}]
  %s5 = inlined_call_operand.vmem [shape: f32[64,96], index: 5, kind: input, shape index: {}]
  %s6 = inlined_call_operand.vmem [shape: f32[32,32], index: 6, kind: input, shape index: {}]
  %s7 = inlined_call_operand.vmem [shape: f32[32,32], index: 7, kind: input, shape index: {}]
  %s8 = inlined_call_operand.vmem [shape: f32[96,1], index: 8, kind: input, shape index: {}]
  %s9 = inlined_call_operand.vmem [shape: f32[1,32], index: 9, kind: input, shape index: {}]
  %s10 = inlined_call_operand.vmem [shape: f32[32,16], index: 10, kind: output, shape index: {0}]
  %s11 = inlined_call_operand.vmem [shape: f32[2,10,8], index: 11, kind: output, shape index: {1}]
  %12 = xla_tuple %s10, %s11
  %s13 = sld [smem:[#allocation0]]
  $region58: #{tpu_custom_call.1} parent=0
    _
  %s15 = ssub.s32 1, %s13
  %s16 = scalar_select 0, %s15, %s13
  // Predicated region
  $region2: #{tpu_custom_call.1} parent=0 // pred_check
    _
  $region3: #{tpu_custom_call.1} parent=0 // pred_check_branch
    %18 = sbr.rel (0) target = $region5
  $region4: #{tpu_custom_call.1} parent=0 // pred_region
    _
  $region5: #{tpu_custom_call.1} parent=0 // pred_fallthru
    _
  // Predicated region
  $region6: #{tpu_custom_call.1} parent=0 // pred_check
    _
  $region7: #{tpu_custom_call.1} parent=0 // pred_check_branch
    %20 = sbr.rel (0) target = $region9
  $region8: #{tpu_custom_call.1} parent=0 // pred_region
    _
  $region9: #{tpu_custom_call.1} parent=0 // pred_fallthru
    _
  // Predicated region
  $region10: #{tpu_custom_call.1} parent=0 // pred_check
    _
  $region11: #{tpu_custom_call.1} parent=0 // pred_check_branch
    %22 = sbr.rel (0) target = $region13
  $region12: #{tpu_custom_call.1} parent=0 // pred_region
    _
  $region13: #{tpu_custom_call.1} parent=0 // pred_fallthru
    _
  // Predicated region
  $region14: #{tpu_custom_call.1} parent=0 // pred_check
    _
  $region15: #{tpu_custom_call.1} parent=0 // pred_check_branch
    %24 = sbr.rel (0) target = $region17
  $region16: #{tpu_custom_call.1} parent=0 // pred_region
    _
  $region17: #{tpu_custom_call.1} parent=0 // pred_fallthru
    _
  // Predicated region
  $region18: #{tpu_custom_call.1} parent=0 // pred_check
    _
  $region19: #{tpu_custom_call.1} parent=0 // pred_check_branch
    %26 = sbr.rel (0) target = $region21
  $region20: #{tpu_custom_call.1} parent=0 // pred_region
    _
  $region21: #{tpu_custom_call.1} parent=0 // pred_fallthru
    _
  // Predicated region
  $region22: #{tpu_custom_call.1} parent=0 // pred_check
    _
  $region23: #{tpu_custom_call.1} parent=0 // pred_check_branch
    %28 = sbr.rel (0) target = $region25
  $region24: #{tpu_custom_call.1} parent=0 // pred_region
    _
  $region25: #{tpu_custom_call.1} parent=0 // pred_fallthru
    _
  // Predicated region
  $region26: #{tpu_custom_call.1} parent=0 // pred_check
    _
  $region27: #{tpu_custom_call.1} parent=0 // pred_check_branch
    %30 = sbr.rel (0) target = $region29
  $region28: #{tpu_custom_call.1} parent=0 // pred_region
    _
  $region29: #{tpu_custom_call.1} parent=0 // pred_fallthru
    _
  // Predicated region
  $region30: #{tpu_custom_call.1} parent=0 // pred_check
    _
  $region31: #{tpu_custom_call.1} parent=0 // pred_check_branch
    %32 = sbr.rel (0) target = $region33
  $region32: #{tpu_custom_call.1} parent=0 // pred_region
    _
  $region33: #{tpu_custom_call.1} parent=0 // pred_fallthru
    _
  // Predicated region
  $region34: #{tpu_custom_call.1} parent=0 // pred_check
    _
  $region35: #{tpu_custom_call.1} parent=0 // pred_check_branch
    %34 = sbr.rel (0) target = $region37
  $region36: #{tpu_custom_call.1} parent=0 // pred_region
    _
  $region37: #{tpu_custom_call.1} parent=0 // pred_fallthru
    _
  // Predicated region
  $region38: #{tpu_custom_call.1} parent=0 // pred_check
    _
  $region39: #{tpu_custom_call.1} parent=0 // pred_check_branch
    %36 = sbr.rel (0) target = $region41
  $region40: #{tpu_custom_call.1} parent=0 // pred_region
    _
  $region41: #{tpu_custom_call.1} parent=0 // pred_fallthru
    _
  %v37 = vld [vmem:[%s0] sm:$0xff]
  %v38 = vld [vmem:[%s0 + $0x8] sm:$0xff]
  %v39 = vld [vmem:[%s0 + $0x10] sm:$0xff]
  %v40 = vld [vmem:[%s0 + $0x18] sm:$0xff]
  %v41 = vld [vmem:[%s1] sm:$0x1]
  %v42 = vld [vmem:[%s8] sm:$0xff]
  %v43 = vld [vmem:[%s8 + $0x8] sm:$0xff]
  %v44 = vld [vmem:[%s8 + $0x10] sm:$0xff]
  %v45 = vld [vmem:[%s8 + $0x18] sm:$0xff]
  %v46 = vld [vmem:[%s8 + $0x20] sm:$0xff]
  %v47 = vld [vmem:[%s8 + $0x28] sm:$0xff]
  %v48 = vld [vmem:[%s8 + $0x30] sm:$0xff]
  %v49 = vld [vmem:[%s8 + $0x38] sm:$0xff]
  %v50 = vld [vmem:[%s8 + $0x40] sm:$0xff]
  %v51 = vld [vmem:[%s8 + $0x48] sm:$0xff]
  %v52 = vld [vmem:[%s8 + $0x50] sm:$0xff]
  %v53 = vld [vmem:[%s8 + $0x58] sm:$0xff]
  %58 = vrot.lane.b32.xlu0 %v37, 2
  %v59 = vpop.permute.xlu0 %58
  %60 = vrot.lane.b32.xlu0 %v38, 2
  %v61 = vpop.permute.xlu0 %60
  %62 = vrot.lane.b32.xlu0 %v39, 2
  %v63 = vpop.permute.xlu0 %62
  %64 = vrot.lane.b32.xlu0 %v40, 2
  %v65 = vpop.permute.xlu0 %64
  %vm70 = vcmask 15360
  %v71 = vsel %vm70, 0.0, %v59
  %v72 = vsel %vm70, 0.0, %v61
  %v73 = vsel %vm70, 0.0, %v63
  %v74 = vsel %vm70, 0.0, %v65
  %vm75 = vcmp.ge.s32.totalorder %v41, 2
  %v76 = vsel %vm75, 1, 0
  %v77 = vlaneseq
  %v78 = vshrl.u32 %v77, 7
  %v79 = vsub.s32 0, %v78
  %v80 = vrot.slane %v76, %v79
  %vm81 = vcmp.eq.s32.totalorder %v80, 1
  %v82 = vsel %vm81, %v71, 0.0
  %v83 = vsel %vm81, %v72, 0.0
  %v84 = vsel %vm81, %v73, 0.0
  %v85 = vsel %vm81, %v74, 0.0
  %86 = vrot.lane.b32.xlu0 %v37, 1
  %v87 = vpop.permute.xlu0 %86
  %88 = vrot.lane.b32.xlu0 %v38, 1
  %v89 = vpop.permute.xlu0 %88
  %90 = vrot.lane.b32.xlu0 %v39, 1
  %v91 = vpop.permute.xlu0 %90
  %92 = vrot.lane.b32.xlu0 %v40, 1
  %v93 = vpop.permute.xlu0 %92
  %vm98 = vcmask 7168
  %v99 = vsel %vm98, 0.0, %v87
  %v100 = vsel %vm98, 0.0, %v89
  %v101 = vsel %vm98, 0.0, %v91
  %v102 = vsel %vm98, 0.0, %v93
  %vm103 = vcmp.ge.s32.totalorder %v41, 1
  %v104 = vsel %vm103, 1, 0
  %v105 = vlaneseq
  %v106 = vshrl.u32 %v105, 7
  %v107 = vsub.s32 0, %v106
  %v108 = vrot.slane %v104, %v107
  %vm109 = vcmp.eq.s32.totalorder %v108, 1
  %v110 = vsel %vm109, %v99, 0.0
  %v111 = vsel %vm109, %v100, 0.0
  %v112 = vsel %vm109, %v101, 0.0
  %v113 = vsel %vm109, %v102, 0.0
  %v114 = vld [vmem:[%s5] sm:$0xff]
  %v115 = vld [vmem:[%s5 + $0x8] sm:$0xff]
  %v116 = vld [vmem:[%s5 + $0x10] sm:$0xff]
  %v117 = vld [vmem:[%s5 + $0x18] sm:$0xff]
  %v118 = vld [vmem:[%s5 + $0x20] sm:$0xff]
  %v119 = vld [vmem:[%s5 + $0x28] sm:$0xff]
  %v120 = vld [vmem:[%s5 + $0x30] sm:$0xff]
  %v121 = vld [vmem:[%s5 + $0x38] sm:$0xff]
  %123 = vset.pattern.permute.xlu0 0
  %124 = vperm.xlu0 %123, %v42
  %v125 = vpop.permute.xlu0 %124
  %128 = vset.pattern.permute.xlu0 0
  %129 = vperm.xlu0 %128, %v43
  %v130 = vpop.permute.xlu0 %129
  %133 = vset.pattern.permute.xlu0 0
  %134 = vperm.xlu0 %133, %v44
  %v135 = vpop.permute.xlu0 %134
  %138 = vset.pattern.permute.xlu0 0
  %139 = vperm.xlu0 %138, %v45
  %v140 = vpop.permute.xlu0 %139
  %143 = vset.pattern.permute.xlu0 0
  %144 = vperm.xlu0 %143, %v46
  %v145 = vpop.permute.xlu0 %144
  %148 = vset.pattern.permute.xlu0 0
  %149 = vperm.xlu0 %148, %v47
  %v150 = vpop.permute.xlu0 %149
  %153 = vset.pattern.permute.xlu0 0
  %154 = vperm.xlu0 %153, %v48
  %v155 = vpop.permute.xlu0 %154
  %158 = vset.pattern.permute.xlu0 0
  %159 = vperm.xlu0 %158, %v49
  %v160 = vpop.permute.xlu0 %159
  %vm162 = vcmask 785408
  %v164 = vsel %vm162, %v114, 0
  %v167 = vsel %vm162, %v115, 0
  %v170 = vsel %vm162, %v116, 0
  %v173 = vsel %vm162, %v117, 0
  %v176 = vsel %vm162, %v118, 0
  %v179 = vsel %vm162, %v119, 0
  %v182 = vsel %vm162, %v120, 0
  %v185 = vsel %vm162, %v121, 0
  %187 = vmatprep.subr.mxu0 0.0
  %188 = vmatpush1.msra.mxu0 %v82
  %189 = vmatprep.subr.mxu0 0.0
  %190 = vmatpush1.msra.mxu0 %v83
  %191 = vmatprep.subr.mxu0 0.0
  %192 = vmatpush1.msra.mxu0 %v84
  %193 = vmatprep.subr.mxu0 0.0
  %194 = vmatpush1.msra.mxu0 %v85
  %195 = vmatprep.subr.mxu0 0.0
  %196 = vmatpush1.msra.mxu0 %v110
  %197 = vmatprep.subr.mxu0 0.0
  %198 = vmatpush1.msra.mxu0 %v111
  %199 = vmatprep.subr.mxu0 0.0
  %200 = vmatpush1.msra.mxu0 %v112
  %201 = vmatprep.subr.mxu0 0.0
  %202 = vmatpush1.msra.mxu0 %v113
  %203 = vmatprep.subr.mxu0 0.0
  %204 = vmatpush1.msra.mxu0 %v37
  %205 = vmatprep.subr.mxu0 0.0
  %206 = vmatpush1.msra.mxu0 %v38
  %207 = vmatprep.subr.mxu0 0.0
  %208 = vmatpush1.msra.mxu0 %v39
  %209 = vmatprep.subr.mxu0 0.0
  %210 = vmatpush1.msra.mxu0 %v40
  %211 = vmatprep.subr.mxu0 0.0
  %212 = vmatpush1.msra.mxu0 0.0
  %213 = vmatprep.subr.mxu0 0.0
  %214 = vmatpush1.msra.mxu0 0.0
  %215 = vmatprep.subr.mxu0 0.0
  %216 = vmatpush1.msra.mxu0 0.0
  %217 = vmatprep.subr.mxu0 0.0
  %218 = vmatpush1.msra.mxu0 0.0
  %219 = vmatprep.subr.mxu0 0.0
  %220 = vmatpush1.msra.mxu0 0.0
  %221 = vmatprep.subr.mxu0 0.0
  %222 = vmatpush1.msra.mxu0 0.0
  %223 = vmatprep.subr.mxu0 0.0
  %224 = vmatpush1.msra.mxu0 0.0
  %225 = vmatprep.subr.mxu0 0.0
  %226 = vmatpush1.msra.mxu0 0.0
  %227 = vmatprep.subr.mxu0 0.0
  %228 = vmatpush1.msra.mxu0 0.0
  %229 = vmatprep.subr.mxu0 0.0
  %230 = vmatpush1.msra.mxu0 0.0
  %231 = vmatprep.subr.mxu0 0.0
  %232 = vmatpush1.msra.mxu0 0.0
  %233 = vmatprep.subr.mxu0 0.0
  %234 = vmatpush1.msra.mxu0 0.0
  %235 = vmatprep.subr.mxu0 0.0
  %236 = vmatpush1.msra.mxu0 0.0
  %237 = vmatprep.subr.mxu0 0.0
  %238 = vmatpush1.msra.mxu0 0.0
  %239 = vmatprep.subr.mxu0 0.0
  %240 = vmatpush1.msra.mxu0 0.0
  %241 = vmatprep.subr.mxu0 0.0
  %242 = vmatpush1.msra.mxu0 0.0
  %243 = vmatprep.subr.mxu0 0.0
  %244 = vmatpush1.msra.mxu0 0.0
  %245 = vmatprep.subr.mxu0 0.0
  %246 = vmatpush1.msra.mxu0 0.0
  %247 = vmatprep.subr.mxu0 0.0
  %248 = vmatpush1.msra.mxu0 0.0
  %249 = vmatprep.subr.mxu0 0.0
  %250 = vmatpush1.msra.mxu0 0.0
  %251 = vmatprep.mubr.f32.mxu0 0.0
  %252 = vmatmul.mubr.f32.gmra.mrb[0].mxu0 %v164
  %v253 = vpop.f32.mrb[0].mxu0
  %v254 = vadd.f32 %v125, %v253
  %v255 = vpop.f32.mrb[0].mxu0
  %256 = vmatprep.mubr.f32.mxu0 0.0
  %257 = vmatmul.mubr.f32.gmra.mrb[0].mxu0 %v167
  %v258 = vpop.f32.mrb[0].mxu0
  %v259 = vadd.f32 %v130, %v258
  %v260 = vpop.f32.mrb[0].mxu0
  %261 = vmatprep.mubr.f32.mxu0 0.0
  %262 = vmatmul.mubr.f32.gmra.mrb[0].mxu0 %v170
  %v263 = vpop.f32.mrb[0].mxu0
  %v264 = vadd.f32 %v135, %v263
  %v265 = vpop.f32.mrb[0].mxu0
  %266 = vmatprep.mubr.f32.mxu0 0.0
  %267 = vmatmul.mubr.f32.gmra.mrb[0].mxu0 %v173
  %v268 = vpop.f32.mrb[0].mxu0
  %v269 = vadd.f32 %v140, %v268
  %v270 = vpop.f32.mrb[0].mxu0
  %271 = vmatprep.mubr.f32.mxu0 0.0
  %272 = vmatmul.mubr.f32.gmra.mrb[0].mxu0 %v176
  %v273 = vpop.f32.mrb[0].mxu0
  %v274 = vadd.f32 %v145, %v273
  %v275 = vpop.f32.mrb[0].mxu0
  %276 = vmatprep.mubr.f32.mxu0 0.0
  %277 = vmatmul.mubr.f32.gmra.mrb[0].mxu0 %v179
  %v278 = vpop.f32.mrb[0].mxu0
  %v279 = vadd.f32 %v150, %v278
  %v280 = vpop.f32.mrb[0].mxu0
  %281 = vmatprep.mubr.f32.mxu0 0.0
  %282 = vmatmul.mubr.f32.gmra.mrb[0].mxu0 %v182
  %v283 = vpop.f32.mrb[0].mxu0
  %v284 = vadd.f32 %v155, %v283
  %v285 = vpop.f32.mrb[0].mxu0
  %286 = vmatprep.mubr.f32.mxu0 0.0
  %287 = vmatmul.mubr.f32.gmra.mrb[0].mxu0 %v185
  %v288 = vpop.f32.mrb[0].mxu0
  %v289 = vadd.f32 %v160, %v288
  %v290 = vpop.f32.mrb[0].mxu0
  %291 = vdwg.mxu0
  %v292 = vxor.u32 %v274, 2147483648
  %v293 = vxor.u32 %v279, 2147483648
  %v294 = vxor.u32 %v284, 2147483648
  %v295 = vxor.u32 %v289, 2147483648
  %v296 = vmul.f32 %v292, 1.442695
  %v297 = vpow.pop %v296
  %v298 = vmul.f32 %v293, 1.442695
  %v299 = vpow.pop %v298
  %v300 = vmul.f32 %v294, 1.442695
  %v301 = vpow.pop %v300
  %v302 = vmul.f32 %v295, 1.442695
  %v303 = vpow.pop %v302
  %v304 = vadd.f32 %v297, 1.0
  %v305 = vadd.f32 %v299, 1.0
  %v306 = vadd.f32 %v301, 1.0
  %v307 = vadd.f32 %v303, 1.0
  %v308 = vrcp.pop %v304
  %v309 = vmul.f32 1.0, %v308
  %v310 = vrcp.pop %v305
  %v311 = vmul.f32 1.0, %v310
  %v312 = vrcp.pop %v306
  %v313 = vmul.f32 1.0, %v312
  %v314 = vrcp.pop %v307
  %v315 = vmul.f32 1.0, %v314
  %v316 = vmul.f32 %v254, %v309
  %v317 = vmul.f32 %v259, %v311
  %v318 = vmul.f32 %v264, %v313
  %v319 = vmul.f32 %v269, %v315
  %v320 = vld [vmem:[%s6] sm:$0xff]
  %v321 = vld [vmem:[%s6 + $0x8] sm:$0xff]
  %v322 = vld [vmem:[%s6 + $0x10] sm:$0xff]
  %v323 = vld [vmem:[%s6 + $0x18] sm:$0xff]
  %v324 = vld [vmem:[%s9] sm:$0x1]
  %v326 = vlaneseq
  %v327 = vshrl.u32 %v326, 7
  %v328 = vsub.s32 0, %v327
  %v329 = vrot.slane %v324, %v328
  %331 = vxpose.xlu0.b32.start [1/16] %v316, 128
  %332 = vxpose.xlu0.b32.cont [2/16] %v317, 128
  %333 = vxpose.xlu0.b32.cont [3/16] %v318, 128
  %334 = vxpose.xlu0.b32.cont [4/16] %v319, 128
  %335 = vxpose.xlu0.b32.cont [5/16] 0.0, 128
  %336 = vxpose.xlu0.b32.cont [6/16] 0.0, 128
  %337 = vxpose.xlu0.b32.cont [7/16] 0.0, 128
  %338 = vxpose.xlu0.b32.cont [8/16] 0.0, 128
  %339 = vxpose.xlu0.b32.cont [9/16] 0.0, 128
  %340 = vxpose.xlu0.b32.cont [10/16] 0.0, 128
  %341 = vxpose.xlu0.b32.cont [11/16] 0.0, 128
  %342 = vxpose.xlu0.b32.cont [12/16] 0.0, 128
  %343 = vxpose.xlu0.b32.cont [13/16] 0.0, 128
  %344 = vxpose.xlu0.b32.cont [14/16] 0.0, 128
  %345 = vxpose.xlu0.b32.cont [15/16] 0.0, 128
  %346 = vxpose.xlu0.b32.end [16/16] 0.0, 128
  %v347 = vpop.trf.xlu0
  %v348 = vpop.trf.xlu0
  %v349 = vpop.trf.xlu0
  %v350 = vpop.trf.xlu0
  %v351 = vpop.trf.xlu0
  %v352 = vpop.trf.xlu0
  %v353 = vpop.trf.xlu0
  %v354 = vpop.trf.xlu0
  %v355 = vpop.trf.xlu0
  %v356 = vpop.trf.xlu0
  %v357 = vpop.trf.xlu0
  %v358 = vpop.trf.xlu0
  %v359 = vpop.trf.xlu0
  %v360 = vpop.trf.xlu0
  %v361 = vpop.trf.xlu0
  %v362 = vpop.trf.xlu0
  %vm363 = vcmask 261120
  %v365 = vsel %vm363, %v347, 0
  %v368 = vsel %vm363, %v348, 0
  %v371 = vsel %vm363, %v320, 0
  %v374 = vsel %vm363, %v321, 0
  %v377 = vsel %vm363, %v322, 0
  %v380 = vsel %vm363, %v323, 0
  %382 = vmatprep.subr.mxu0 0.0
  %383 = vmatpush1.xpose.msra.mxu0 %v371
  %384 = vmatprep.subr.mxu0 0.0
  %385 = vmatpush1.xpose.msra.mxu0 %v374
  %386 = vmatprep.subr.mxu0 0.0
  %387 = vmatpush1.xpose.msra.mxu0 %v377
  %388 = vmatprep.subr.mxu0 0.0
  %389 = vmatpush1.xpose.msra.mxu0 %v380
  %390 = vmatprep.subr.mxu0 0.0
  %391 = vmatpush1.xpose.msra.mxu0 0.0
  %392 = vmatprep.subr.mxu0 0.0
  %393 = vmatpush1.xpose.msra.mxu0 0.0
  %394 = vmatprep.subr.mxu0 0.0
  %395 = vmatpush1.xpose.msra.mxu0 0.0
  %396 = vmatprep.subr.mxu0 0.0
  %397 = vmatpush1.xpose.msra.mxu0 0.0
  %398 = vmatprep.subr.mxu0 0.0
  %399 = vmatpush1.xpose.msra.mxu0 0.0
  %400 = vmatprep.subr.mxu0 0.0
  %401 = vmatpush1.xpose.msra.mxu0 0.0
  %402 = vmatprep.subr.mxu0 0.0
  %403 = vmatpush1.xpose.msra.mxu0 0.0
  %404 = vmatprep.subr.mxu0 0.0
  %405 = vmatpush1.xpose.msra.mxu0 0.0
  %406 = vmatprep.subr.mxu0 0.0
  %407 = vmatpush1.xpose.msra.mxu0 0.0
  %408 = vmatprep.subr.mxu0 0.0
  %409 = vmatpush1.xpose.msra.mxu0 0.0
  %410 = vmatprep.subr.mxu0 0.0
  %411 = vmatpush1.xpose.msra.mxu0 0.0
  %412 = vmatprep.subr.mxu0 0.0
  %413 = vmatpush1.xpose.msra.mxu0 0.0
  %414 = vmatprep.subr.mxu0 0.0
  %415 = vmatpush1.xpose.msra.mxu0 0.0
  %416 = vmatprep.subr.mxu0 0.0
  %417 = vmatpush1.xpose.msra.mxu0 0.0
  %418 = vmatprep.subr.mxu0 0.0
  %419 = vmatpush1.xpose.msra.mxu0 0.0
  %420 = vmatprep.subr.mxu0 0.0
  %421 = vmatpush1.xpose.msra.mxu0 0.0
  %422 = vmatprep.subr.mxu0 0.0
  %423 = vmatpush1.xpose.msra.mxu0 0.0
  %424 = vmatprep.subr.mxu0 0.0
  %425 = vmatpush1.xpose.msra.mxu0 0.0
  %426 = vmatprep.subr.mxu0 0.0
  %427 = vmatpush1.xpose.msra.mxu0 0.0
  %428 = vmatprep.subr.mxu0 0.0
  %429 = vmatpush1.xpose.msra.mxu0 0.0
  %430 = vmatprep.subr.mxu0 0.0
  %431 = vmatpush1.xpose.msra.mxu0 0.0
  %432 = vmatprep.subr.mxu0 0.0
  %433 = vmatpush1.xpose.msra.mxu0 0.0
  %434 = vmatprep.subr.mxu0 0.0
  %435 = vmatpush1.xpose.msra.mxu0 0.0
  %436 = vmatprep.subr.mxu0 0.0
  %437 = vmatpush1.xpose.msra.mxu0 0.0
  %438 = vmatprep.subr.mxu0 0.0
  %439 = vmatpush1.xpose.msra.mxu0 0.0
  %440 = vmatprep.subr.mxu0 0.0
  %441 = vmatpush1.xpose.msra.mxu0 0.0
  %442 = vmatprep.subr.mxu0 0.0
  %443 = vmatpush1.xpose.msra.mxu0 0.0
  %444 = vmatprep.subr.mxu0 0.0
  %445 = vmatpush1.xpose.msra.mxu0 0.0
  %446 = vmatprep.mubr.f32.mxu0 0.0
  %447 = vmatmul.mubr.f32.gmra.mrb[0].mxu0 %v365
  %v448 = vpop.f32.mrb[0].mxu0
  %v449 = vadd.f32 %v329, %v448
  %v450 = vpop.f32.mrb[0].mxu0
  %451 = vmatprep.mubr.f32.mxu0 0.0
  %452 = vmatmul.mubr.f32.gmra.mrb[0].mxu0 %v368
  %v453 = vpop.f32.mrb[0].mxu0
  %v454 = vadd.f32 %v329, %v453
  %v455 = vpop.f32.mrb[0].mxu0
  %456 = vdwg.mxu0
  %v457 = vld [vmem:[%s2] sm:$0xff]
  %v458 = vld [vmem:[%s2 + $0x8] sm:$0xff]
  %v459 = vadd.f32 %v449, %v457
  %v460 = vadd.f32 %v454, %v458
  %v461 = vmul.f32 %v459, 0.70710677
  %v462 = vmul.f32 %v460, 0.70710677
  %v463 = vld [vmem:[%s3] sm:$0xff]
  %v464 = vld [vmem:[%s3 + $0x8] sm:$0x3]
  %v465 = vld [vmem:[%s3 + $0x10] sm:$0xff]
  %v466 = vld [vmem:[%s3 + $0x18] sm:$0x3]
  %v468 = vsel %vm363, %v463, 0
  %v471 = vsel %vm363, %v464, 0
  %v474 = vsel %vm363, %v461, 0
  %476 = vmatprep.subr.mxu0 0.0
  %477 = vmatpush1.xpose.msra.mxu0 %v474
  %478 = vmatprep.subr.mxu0 0.0
  %479 = vmatpush1.xpose.msra.mxu0 0.0
  %480 = vmatprep.subr.mxu0 0.0
  %481 = vmatpush1.xpose.msra.mxu0 0.0
  %482 = vmatprep.subr.mxu0 0.0
  %483 = vmatpush1.xpose.msra.mxu0 0.0
  %484 = vmatprep.subr.mxu0 0.0
  %485 = vmatpush1.xpose.msra.mxu0 0.0
  %486 = vmatprep.subr.mxu0 0.0
  %487 = vmatpush1.xpose.msra.mxu0 0.0
  %488 = vmatprep.subr.mxu0 0.0
  %489 = vmatpush1.xpose.msra.mxu0 0.0
  %490 = vmatprep.subr.mxu0 0.0
  %491 = vmatpush1.xpose.msra.mxu0 0.0
  %492 = vmatprep.subr.mxu0 0.0
  %493 = vmatpush1.xpose.msra.mxu0 0.0
  %494 = vmatprep.subr.mxu0 0.0
  %495 = vmatpush1.xpose.msra.mxu0 0.0
  %496 = vmatprep.subr.mxu0 0.0
  %497 = vmatpush1.xpose.msra.mxu0 0.0
  %498 = vmatprep.subr.mxu0 0.0
  %499 = vmatpush1.xpose.msra.mxu0 0.0
  %500 = vmatprep.subr.mxu0 0.0
  %501 = vmatpush1.xpose.msra.mxu0 0.0
  %502 = vmatprep.subr.mxu0 0.0
  %503 = vmatpush1.xpose.msra.mxu0 0.0
  %504 = vmatprep.subr.mxu0 0.0
  %505 = vmatpush1.xpose.msra.mxu0 0.0
  %506 = vmatprep.subr.mxu0 0.0
  %507 = vmatpush1.xpose.msra.mxu0 0.0
  %508 = vmatprep.subr.mxu0 0.0
  %509 = vmatpush1.xpose.msra.mxu0 0.0
  %510 = vmatprep.subr.mxu0 0.0
  %511 = vmatpush1.xpose.msra.mxu0 0.0
  %512 = vmatprep.subr.mxu0 0.0
  %513 = vmatpush1.xpose.msra.mxu0 0.0
  %514 = vmatprep.subr.mxu0 0.0
  %515 = vmatpush1.xpose.msra.mxu0 0.0
  %516 = vmatprep.subr.mxu0 0.0
  %517 = vmatpush1.xpose.msra.mxu0 0.0
  %518 = vmatprep.subr.mxu0 0.0
  %519 = vmatpush1.xpose.msra.mxu0 0.0
  %520 = vmatprep.subr.mxu0 0.0
  %521 = vmatpush1.xpose.msra.mxu0 0.0
  %522 = vmatprep.subr.mxu0 0.0
  %523 = vmatpush1.xpose.msra.mxu0 0.0
  %524 = vmatprep.subr.mxu0 0.0
  %525 = vmatpush1.xpose.msra.mxu0 0.0
  %526 = vmatprep.subr.mxu0 0.0
  %527 = vmatpush1.xpose.msra.mxu0 0.0
  %528 = vmatprep.subr.mxu0 0.0
  %529 = vmatpush1.xpose.msra.mxu0 0.0
  %530 = vmatprep.subr.mxu0 0.0
  %531 = vmatpush1.xpose.msra.mxu0 0.0
  %532 = vmatprep.subr.mxu0 0.0
  %533 = vmatpush1.xpose.msra.mxu0 0.0
  %534 = vmatprep.subr.mxu0 0.0
  %535 = vmatpush1.xpose.msra.mxu0 0.0
  %536 = vmatprep.subr.mxu0 0.0
  %537 = vmatpush1.xpose.msra.mxu0 0.0
  %538 = vmatprep.subr.mxu0 0.0
  %539 = vmatpush1.xpose.msra.mxu0 0.0
  %540 = vmatprep.mubr.f32.mxu0 0.0
  %541 = vmatmul.mubr.f32.gmra.mrb[0].mxu0 %v468
  %v542 = vpop.f32.mrb[0].mxu0
  %v543 = vadd.f32 0.0, %v542
  %v544 = vpop.f32.mrb[0].mxu0
  %545 = vmatprep.mubr.f32.mxu0 0.0
  %546 = vmatmul.mubr.f32.gmra.mrb[0].mxu0 %v471
  %v547 = vpop.f32.mrb[0].mxu0
  %v548 = vadd.f32 0.0, %v547
  %v549 = vpop.f32.mrb[0].mxu0
  %550 = vdwg.mxu0
  %v552 = vsel %vm363, %v465, 0
  %v555 = vsel %vm363, %v466, 0
  %v558 = vsel %vm363, %v462, 0
  %560 = vmatprep.subr.mxu0 0.0
  %561 = vmatpush1.xpose.msra.mxu0 %v558
  %562 = vmatprep.subr.mxu0 0.0
  %563 = vmatpush1.xpose.msra.mxu0 0.0
  %564 = vmatprep.subr.mxu0 0.0
  %565 = vmatpush1.xpose.msra.mxu0 0.0
  %566 = vmatprep.subr.mxu0 0.0
  %567 = vmatpush1.xpose.msra.mxu0 0.0
  %568 = vmatprep.subr.mxu0 0.0
  %569 = vmatpush1.xpose.msra.mxu0 0.0
  %570 = vmatprep.subr.mxu0 0.0
  %571 = vmatpush1.xpose.msra.mxu0 0.0
  %572 = vmatprep.subr.mxu0 0.0
  %573 = vmatpush1.xpose.msra.mxu0 0.0
  %574 = vmatprep.subr.mxu0 0.0
  %575 = vmatpush1.xpose.msra.mxu0 0.0
  %576 = vmatprep.subr.mxu0 0.0
  %577 = vmatpush1.xpose.msra.mxu0 0.0
  %578 = vmatprep.subr.mxu0 0.0
  %579 = vmatpush1.xpose.msra.mxu0 0.0
  %580 = vmatprep.subr.mxu0 0.0
  %581 = vmatpush1.xpose.msra.mxu0 0.0
  %582 = vmatprep.subr.mxu0 0.0
  %583 = vmatpush1.xpose.msra.mxu0 0.0
  %584 = vmatprep.subr.mxu0 0.0
  %585 = vmatpush1.xpose.msra.mxu0 0.0
  %586 = vmatprep.subr.mxu0 0.0
  %587 = vmatpush1.xpose.msra.mxu0 0.0
  %588 = vmatprep.subr.mxu0 0.0
  %589 = vmatpush1.xpose.msra.mxu0 0.0
  %590 = vmatprep.subr.mxu0 0.0
  %591 = vmatpush1.xpose.msra.mxu0 0.0
  %592 = vmatprep.subr.mxu0 0.0
  %593 = vmatpush1.xpose.msra.mxu0 0.0
  %594 = vmatprep.subr.mxu0 0.0
  %595 = vmatpush1.xpose.msra.mxu0 0.0
  %596 = vmatprep.subr.mxu0 0.0
  %597 = vmatpush1.xpose.msra.mxu0 0.0
  %598 = vmatprep.subr.mxu0 0.0
  %599 = vmatpush1.xpose.msra.mxu0 0.0
  %600 = vmatprep.subr.mxu0 0.0
  %601 = vmatpush1.xpose.msra.mxu0 0.0
  %602 = vmatprep.subr.mxu0 0.0
  %603 = vmatpush1.xpose.msra.mxu0 0.0
  %604 = vmatprep.subr.mxu0 0.0
  %605 = vmatpush1.xpose.msra.mxu0 0.0
  %606 = vmatprep.subr.mxu0 0.0
  %607 = vmatpush1.xpose.msra.mxu0 0.0
  %608 = vmatprep.subr.mxu0 0.0
  %609 = vmatpush1.xpose.msra.mxu0 0.0
  %610 = vmatprep.subr.mxu0 0.0
  %611 = vmatpush1.xpose.msra.mxu0 0.0
  %612 = vmatprep.subr.mxu0 0.0
  %613 = vmatpush1.xpose.msra.mxu0 0.0
  %614 = vmatprep.subr.mxu0 0.0
  %615 = vmatpush1.xpose.msra.mxu0 0.0
  %616 = vmatprep.subr.mxu0 0.0
  %617 = vmatpush1.xpose.msra.mxu0 0.0
  %618 = vmatprep.subr.mxu0 0.0
  %619 = vmatpush1.xpose.msra.mxu0 0.0
  %620 = vmatprep.subr.mxu0 0.0
  %621 = vmatpush1.xpose.msra.mxu0 0.0
  %622 = vmatprep.subr.mxu0 0.0
  %623 = vmatpush1.xpose.msra.mxu0 0.0
  %624 = vmatprep.mubr.f32.mxu0 0.0
  %625 = vmatmul.mubr.f32.gmra.mrb[0].mxu0 %v552
  %v626 = vpop.f32.mrb[0].mxu0
  %v627 = vadd.f32 0.0, %v626
  %v628 = vpop.f32.mrb[0].mxu0
  %629 = vmatprep.mubr.f32.mxu0 0.0
  %630 = vmatmul.mubr.f32.gmra.mrb[0].mxu0 %v555
  %v631 = vpop.f32.mrb[0].mxu0
  %v632 = vadd.f32 0.0, %v631
  %v633 = vpop.f32.mrb[0].mxu0
  %634 = vdwg.mxu0
  %vm635 = vcmask 64512
  %v636 = vsel %vm635, %v543, -inf
  %vm637 = vcmask 58368
  %v638 = vsel %vm637, %v548, -inf
  %v639 = vmax.f32 %v636, %v638
  %v640 = vrot.slane %v639, 4
  %v641 = vmax.f32 %v639, %v640
  %v642 = vrot.slane %v641, 2
  %v643 = vmax.f32 %v641, %v642
  %v644 = vrot.slane %v643, 1
  %v645 = vmax.f32 %v643, %v644
  %v646 = vsel %vm635, %v627, -inf
  %v647 = vsel %vm637, %v632, -inf
  %v648 = vmax.f32 %v646, %v647
  %v649 = vrot.slane %v648, 4
  %v650 = vmax.f32 %v648, %v649
  %v651 = vrot.slane %v650, 2
  %v652 = vmax.f32 %v650, %v651
  %v653 = vrot.slane %v652, 1
  %v654 = vmax.f32 %v652, %v653
  %v655 = vsub.f32 %v543, %v645
  %v656 = vsub.f32 %v548, %v645
  %v657 = vsub.f32 %v627, %v654
  %v658 = vsub.f32 %v632, %v654
  %v659 = vmul.f32 %v655, 1.442695
  %v660 = vpow.pop %v659
  %v661 = vmul.f32 %v656, 1.442695
  %v662 = vpow.pop %v661
  %v663 = vmul.f32 %v657, 1.442695
  %v664 = vpow.pop %v663
  %v665 = vmul.f32 %v658, 1.442695
  %v666 = vpow.pop %v665
  %v667 = vsel %vm635, %v660, 0.0
  %v668 = vsel %vm637, %v662, 0.0
  %v669 = vadd.f32 %v667, %v668
  %v670 = vrot.slane %v669, 4
  %v671 = vadd.f32 %v669, %v670
  %v672 = vrot.slane %v671, 2
  %v673 = vadd.f32 %v671, %v672
  %v674 = vrot.slane %v673, 1
  %v675 = vadd.f32 %v673, %v674
  %v676 = vsel %vm635, %v664, 0.0
  %v677 = vsel %vm637, %v666, 0.0
  %v678 = vadd.f32 %v676, %v677
  %v679 = vrot.slane %v678, 4
  %v680 = vadd.f32 %v678, %v679
  %v681 = vrot.slane %v680, 2
  %v682 = vadd.f32 %v680, %v681
  %v683 = vrot.slane %v682, 1
  %v684 = vadd.f32 %v682, %v683
  %v685 = vrcp.pop %v675
  %v686 = vmul.f32 %v660, %v685
  %v687 = vmul.f32 %v662, %v685
  %v688 = vrcp.pop %v684
  %v689 = vmul.f32 %v664, %v688
  %v690 = vmul.f32 %v666, %v688
  %v691 = vld [vmem:[%s4] sm:$0xff]
  %v692 = vld [vmem:[%s4 + $0x8] sm:$0x3]
  %v693 = vld [vmem:[%s4 + $0x10] sm:$0xff]
  %v694 = vld [vmem:[%s4 + $0x18] sm:$0x3]
  %695 = vxpose.xlu0.b32.start [1/16] %v686, 128
  %696 = vxpose.xlu0.b32.cont [2/16] %v687, 128
  %697 = vxpose.xlu0.b32.cont [3/16] 0.0, 128
  %698 = vxpose.xlu0.b32.cont [4/16] 0.0, 128
  %699 = vxpose.xlu0.b32.cont [5/16] 0.0, 128
  %700 = vxpose.xlu0.b32.cont [6/16] 0.0, 128
  %701 = vxpose.xlu0.b32.cont [7/16] 0.0, 128
  %702 = vxpose.xlu0.b32.cont [8/16] 0.0, 128
  %703 = vxpose.xlu0.b32.cont [9/16] 0.0, 128
  %704 = vxpose.xlu0.b32.cont [10/16] 0.0, 128
  %705 = vxpose.xlu0.b32.cont [11/16] 0.0, 128
  %706 = vxpose.xlu0.b32.cont [12/16] 0.0, 128
  %707 = vxpose.xlu0.b32.cont [13/16] 0.0, 128
  %708 = vxpose.xlu0.b32.cont [14/16] 0.0, 128
  %709 = vxpose.xlu0.b32.cont [15/16] 0.0, 128
  %710 = vxpose.xlu0.b32.end [16/16] 0.0, 128
  %v711 = vpop.trf.xlu0
  %v712 = vpop.trf.xlu0
  %v713 = vpop.trf.xlu0
  %v714 = vpop.trf.xlu0
  %v715 = vpop.trf.xlu0
  %v716 = vpop.trf.xlu0
  %v717 = vpop.trf.xlu0
  %v718 = vpop.trf.xlu0
  %v719 = vpop.trf.xlu0
  %v720 = vpop.trf.xlu0
  %v721 = vpop.trf.xlu0
  %v722 = vpop.trf.xlu0
  %v723 = vpop.trf.xlu0
  %v724 = vpop.trf.xlu0
  %v725 = vpop.trf.xlu0
  %v726 = vpop.trf.xlu0
  %vm727 = vcmask 80896
  %v729 = vsel %vm727, %v711, 0
  %vm731 = vcmask 1041408
  %v733 = vsel %vm731, %v692, 0
  %735 = vmatprep.subr.mxu0 0.0
  %736 = vmatpush1.msra.mxu0 %v691
  %737 = vmatprep.subr.mxu0 0.0
  %738 = vmatpush1.msra.mxu0 %v733
  %739 = vmatprep.subr.mxu0 0.0
  %740 = vmatpush1.msra.mxu0 0.0
  %741 = vmatprep.subr.mxu0 0.0
  %742 = vmatpush1.msra.mxu0 0.0
  %743 = vmatprep.subr.mxu0 0.0
  %744 = vmatpush1.msra.mxu0 0.0
  %745 = vmatprep.subr.mxu0 0.0
  %746 = vmatpush1.msra.mxu0 0.0
  %747 = vmatprep.subr.mxu0 0.0
  %748 = vmatpush1.msra.mxu0 0.0
  %749 = vmatprep.subr.mxu0 0.0
  %750 = vmatpush1.msra.mxu0 0.0
  %751 = vmatprep.subr.mxu0 0.0
  %752 = vmatpush1.msra.mxu0 0.0
  %753 = vmatprep.subr.mxu0 0.0
  %754 = vmatpush1.msra.mxu0 0.0
  %755 = vmatprep.subr.mxu0 0.0
  %756 = vmatpush1.msra.mxu0 0.0
  %757 = vmatprep.subr.mxu0 0.0
  %758 = vmatpush1.msra.mxu0 0.0
  %759 = vmatprep.subr.mxu0 0.0
  %760 = vmatpush1.msra.mxu0 0.0
  %761 = vmatprep.subr.mxu0 0.0
  %762 = vmatpush1.msra.mxu0 0.0
  %763 = vmatprep.subr.mxu0 0.0
  %764 = vmatpush1.msra.mxu0 0.0
  %765 = vmatprep.subr.mxu0 0.0
  %766 = vmatpush1.msra.mxu0 0.0
  %767 = vmatprep.subr.mxu0 0.0
  %768 = vmatpush1.msra.mxu0 0.0
  %769 = vmatprep.subr.mxu0 0.0
  %770 = vmatpush1.msra.mxu0 0.0
  %771 = vmatprep.subr.mxu0 0.0
  %772 = vmatpush1.msra.mxu0 0.0
  %773 = vmatprep.subr.mxu0 0.0
  %774 = vmatpush1.msra.mxu0 0.0
  %775 = vmatprep.subr.mxu0 0.0
  %776 = vmatpush1.msra.mxu0 0.0
  %777 = vmatprep.subr.mxu0 0.0
  %778 = vmatpush1.msra.mxu0 0.0
  %779 = vmatprep.subr.mxu0 0.0
  %780 = vmatpush1.msra.mxu0 0.0
  %781 = vmatprep.subr.mxu0 0.0
  %782 = vmatpush1.msra.mxu0 0.0
  %783 = vmatprep.subr.mxu0 0.0
  %784 = vmatpush1.msra.mxu0 0.0
  %785 = vmatprep.subr.mxu0 0.0
  %786 = vmatpush1.msra.mxu0 0.0
  %787 = vmatprep.subr.mxu0 0.0
  %788 = vmatpush1.msra.mxu0 0.0
  %789 = vmatprep.subr.mxu0 0.0
  %790 = vmatpush1.msra.mxu0 0.0
  %791 = vmatprep.subr.mxu0 0.0
  %792 = vmatpush1.msra.mxu0 0.0
  %793 = vmatprep.subr.mxu0 0.0
  %794 = vmatpush1.msra.mxu0 0.0
  %795 = vmatprep.subr.mxu0 0.0
  %796 = vmatpush1.msra.mxu0 0.0
  %797 = vmatprep.subr.mxu0 0.0
  %798 = vmatpush1.msra.mxu0 0.0
  %799 = vmatprep.mubr.f32.mxu0 0.0
  %800 = vmatmul.mubr.f32.gmra.mrb[0].mxu0 %v729
  %v801 = vpop.f32.mrb[0].mxu0
  %v802 = vadd.f32 0.0, %v801
  %v803 = vpop.f32.mrb[0].mxu0
  %804 = vdwg.mxu0
  %805 = vxpose.xlu0.b32.start [1/16] %v689, 128
  %806 = vxpose.xlu0.b32.cont [2/16] %v690, 128
  %807 = vxpose.xlu0.b32.cont [3/16] 0.0, 128
  %808 = vxpose.xlu0.b32.cont [4/16] 0.0, 128
  %809 = vxpose.xlu0.b32.cont [5/16] 0.0, 128
  %810 = vxpose.xlu0.b32.cont [6/16] 0.0, 128
  %811 = vxpose.xlu0.b32.cont [7/16] 0.0, 128
  %812 = vxpose.xlu0.b32.cont [8/16] 0.0, 128
  %813 = vxpose.xlu0.b32.cont [9/16] 0.0, 128
  %814 = vxpose.xlu0.b32.cont [10/16] 0.0, 128
  %815 = vxpose.xlu0.b32.cont [11/16] 0.0, 128
  %816 = vxpose.xlu0.b32.cont [12/16] 0.0, 128
  %817 = vxpose.xlu0.b32.cont [13/16] 0.0, 128
  %818 = vxpose.xlu0.b32.cont [14/16] 0.0, 128
  %819 = vxpose.xlu0.b32.cont [15/16] 0.0, 128
  %820 = vxpose.xlu0.b32.end [16/16] 0.0, 128
  %v821 = vpop.trf.xlu0
  %v822 = vpop.trf.xlu0
  %v823 = vpop.trf.xlu0
  %v824 = vpop.trf.xlu0
  %v825 = vpop.trf.xlu0
  %v826 = vpop.trf.xlu0
  %v827 = vpop.trf.xlu0
  %v828 = vpop.trf.xlu0
  %v829 = vpop.trf.xlu0
  %v830 = vpop.trf.xlu0
  %v831 = vpop.trf.xlu0
  %v832 = vpop.trf.xlu0
  %v833 = vpop.trf.xlu0
  %v834 = vpop.trf.xlu0
  %v835 = vpop.trf.xlu0
  %v836 = vpop.trf.xlu0
  %v838 = vsel %vm727, %v821, 0
  %v841 = vsel %vm731, %v694, 0
  %843 = vmatprep.subr.mxu0 0.0
  %844 = vmatpush1.msra.mxu0 %v693
  %845 = vmatprep.subr.mxu0 0.0
  %846 = vmatpush1.msra.mxu0 %v841
  %847 = vmatprep.subr.mxu0 0.0
  %848 = vmatpush1.msra.mxu0 0.0
  %849 = vmatprep.subr.mxu0 0.0
  %850 = vmatpush1.msra.mxu0 0.0
  %851 = vmatprep.subr.mxu0 0.0
  %852 = vmatpush1.msra.mxu0 0.0
  %853 = vmatprep.subr.mxu0 0.0
  %854 = vmatpush1.msra.mxu0 0.0
  %855 = vmatprep.subr.mxu0 0.0
  %856 = vmatpush1.msra.mxu0 0.0
  %857 = vmatprep.subr.mxu0 0.0
  %858 = vmatpush1.msra.mxu0 0.0
  %859 = vmatprep.subr.mxu0 0.0
  %860 = vmatpush1.msra.mxu0 0.0
  %861 = vmatprep.subr.mxu0 0.0
  %862 = vmatpush1.msra.mxu0 0.0
  %863 = vmatprep.subr.mxu0 0.0
  %864 = vmatpush1.msra.mxu0 0.0
  %865 = vmatprep.subr.mxu0 0.0
  %866 = vmatpush1.msra.mxu0 0.0
  %867 = vmatprep.subr.mxu0 0.0
  %868 = vmatpush1.msra.mxu0 0.0
  %869 = vmatprep.subr.mxu0 0.0
  %870 = vmatpush1.msra.mxu0 0.0
  %871 = vmatprep.subr.mxu0 0.0
  %872 = vmatpush1.msra.mxu0 0.0
  %873 = vmatprep.subr.mxu0 0.0
  %874 = vmatpush1.msra.mxu0 0.0
  %875 = vmatprep.subr.mxu0 0.0
  %876 = vmatpush1.msra.mxu0 0.0
  %877 = vmatprep.subr.mxu0 0.0
  %878 = vmatpush1.msra.mxu0 0.0
  %879 = vmatprep.subr.mxu0 0.0
  %880 = vmatpush1.msra.mxu0 0.0
  %881 = vmatprep.subr.mxu0 0.0
  %882 = vmatpush1.msra.mxu0 0.0
  %883 = vmatprep.subr.mxu0 0.0
  %884 = vmatpush1.msra.mxu0 0.0
  %885 = vmatprep.subr.mxu0 0.0
  %886 = vmatpush1.msra.mxu0 0.0
  %887 = vmatprep.subr.mxu0 0.0
  %888 = vmatpush1.msra.mxu0 0.0
  %889 = vmatprep.subr.mxu0 0.0
  %890 = vmatpush1.msra.mxu0 0.0
  %891 = vmatprep.subr.mxu0 0.0
  %892 = vmatpush1.msra.mxu0 0.0
  %893 = vmatprep.subr.mxu0 0.0
  %894 = vmatpush1.msra.mxu0 0.0
  %895 = vmatprep.subr.mxu0 0.0
  %896 = vmatpush1.msra.mxu0 0.0
  %897 = vmatprep.subr.mxu0 0.0
  %898 = vmatpush1.msra.mxu0 0.0
  %899 = vmatprep.subr.mxu0 0.0
  %900 = vmatpush1.msra.mxu0 0.0
  %901 = vmatprep.subr.mxu0 0.0
  %902 = vmatpush1.msra.mxu0 0.0
  %903 = vmatprep.subr.mxu0 0.0
  %904 = vmatpush1.msra.mxu0 0.0
  %905 = vmatprep.subr.mxu0 0.0
  %906 = vmatpush1.msra.mxu0 0.0
  %907 = vmatprep.mubr.f32.mxu0 0.0
  %908 = vmatmul.mubr.f32.gmra.mrb[0].mxu0 %v838
  %v909 = vpop.f32.mrb[0].mxu0
  %v910 = vadd.f32 0.0, %v909
  %v911 = vpop.f32.mrb[0].mxu0
  %912 = vdwg.mxu0
  %v913 = vld [vmem:[%s7] sm:$0xff]
  %v914 = vld [vmem:[%s7 + $0x8] sm:$0xff]
  %v915 = vld [vmem:[%s7 + $0x10] sm:$0xff]
  %v916 = vld [vmem:[%s7 + $0x18] sm:$0xff]
  %918 = vset.pattern.permute.xlu0 0
  %919 = vperm.xlu0 %918, %v50
  %v920 = vpop.permute.xlu0 %919
  %923 = vset.pattern.permute.xlu0 0
  %924 = vperm.xlu0 %923, %v51
  %v925 = vpop.permute.xlu0 %924
  %928 = vset.pattern.permute.xlu0 0
  %929 = vperm.xlu0 %928, %v52
  %v930 = vpop.permute.xlu0 %929
  %933 = vset.pattern.permute.xlu0 0
  %934 = vperm.xlu0 %933, %v53
  %v935 = vpop.permute.xlu0 %934
  %v938 = vsel %vm363, %v913, 0
  %v941 = vsel %vm363, %v914, 0
  %v944 = vsel %vm363, %v915, 0
  %v947 = vsel %vm363, %v916, 0
  %v950 = vsel %vm363, %v802, 0
  %v953 = vsel %vm363, %v910, 0
  %955 = vmatprep.subr.mxu0 0.0
  %956 = vmatpush1.xpose.msra.mxu0 %v950
  %957 = vmatprep.subr.mxu0 0.0
  %958 = vmatpush1.xpose.msra.mxu0 %v953
  %959 = vmatprep.subr.mxu0 0.0
  %960 = vmatpush1.xpose.msra.mxu0 0.0
  %961 = vmatprep.subr.mxu0 0.0
  %962 = vmatpush1.xpose.msra.mxu0 0.0
  %963 = vmatprep.subr.mxu0 0.0
  %964 = vmatpush1.xpose.msra.mxu0 0.0
  %965 = vmatprep.subr.mxu0 0.0
  %966 = vmatpush1.xpose.msra.mxu0 0.0
  %967 = vmatprep.subr.mxu0 0.0
  %968 = vmatpush1.xpose.msra.mxu0 0.0
  %969 = vmatprep.subr.mxu0 0.0
  %970 = vmatpush1.xpose.msra.mxu0 0.0
  %971 = vmatprep.subr.mxu0 0.0
  %972 = vmatpush1.xpose.msra.mxu0 0.0
  %973 = vmatprep.subr.mxu0 0.0
  %974 = vmatpush1.xpose.msra.mxu0 0.0
  %975 = vmatprep.subr.mxu0 0.0
  %976 = vmatpush1.xpose.msra.mxu0 0.0
  %977 = vmatprep.subr.mxu0 0.0
  %978 = vmatpush1.xpose.msra.mxu0 0.0
  %979 = vmatprep.subr.mxu0 0.0
  %980 = vmatpush1.xpose.msra.mxu0 0.0
  %981 = vmatprep.subr.mxu0 0.0
  %982 = vmatpush1.xpose.msra.mxu0 0.0
  %983 = vmatprep.subr.mxu0 0.0
  %984 = vmatpush1.xpose.msra.mxu0 0.0
  %985 = vmatprep.subr.mxu0 0.0
  %986 = vmatpush1.xpose.msra.mxu0 0.0
  %987 = vmatprep.subr.mxu0 0.0
  %988 = vmatpush1.xpose.msra.mxu0 0.0
  %989 = vmatprep.subr.mxu0 0.0
  %990 = vmatpush1.xpose.msra.mxu0 0.0
  %991 = vmatprep.subr.mxu0 0.0
  %992 = vmatpush1.xpose.msra.mxu0 0.0
  %993 = vmatprep.subr.mxu0 0.0
  %994 = vmatpush1.xpose.msra.mxu0 0.0
  %995 = vmatprep.subr.mxu0 0.0
  %996 = vmatpush1.xpose.msra.mxu0 0.0
  %997 = vmatprep.subr.mxu0 0.0
  %998 = vmatpush1.xpose.msra.mxu0 0.0
  %999 = vmatprep.subr.mxu0 0.0
  %1000 = vmatpush1.xpose.msra.mxu0 0.0
  %1001 = vmatprep.subr.mxu0 0.0
  %1002 = vmatpush1.xpose.msra.mxu0 0.0
  %1003 = vmatprep.subr.mxu0 0.0
  %1004 = vmatpush1.xpose.msra.mxu0 0.0
  %1005 = vmatprep.subr.mxu0 0.0
  %1006 = vmatpush1.xpose.msra.mxu0 0.0
  %1007 = vmatprep.subr.mxu0 0.0
  %1008 = vmatpush1.xpose.msra.mxu0 0.0
  %1009 = vmatprep.subr.mxu0 0.0
  %1010 = vmatpush1.xpose.msra.mxu0 0.0
  %1011 = vmatprep.subr.mxu0 0.0
  %1012 = vmatpush1.xpose.msra.mxu0 0.0
  %1013 = vmatprep.subr.mxu0 0.0
  %1014 = vmatpush1.xpose.msra.mxu0 0.0
  %1015 = vmatprep.subr.mxu0 0.0
  %1016 = vmatpush1.xpose.msra.mxu0 0.0
  %1017 = vmatprep.subr.mxu0 0.0
  %1018 = vmatpush1.xpose.msra.mxu0 0.0
  %1019 = vmatprep.mubr.f32.mxu0 0.0
  %1020 = vmatmul.mubr.f32.gmra.mrb[0].mxu0 %v938
  %v1021 = vpop.f32.mrb[0].mxu0
  %v1022 = vadd.f32 %v920, %v1021
  %v1023 = vpop.f32.mrb[0].mxu0
  %1024 = vmatprep.mubr.f32.mxu0 0.0
  %1025 = vmatmul.mubr.f32.gmra.mrb[0].mxu0 %v941
  %v1026 = vpop.f32.mrb[0].mxu0
  %v1027 = vadd.f32 %v925, %v1026
  %v1028 = vpop.f32.mrb[0].mxu0
  %1029 = vmatprep.mubr.f32.mxu0 0.0
  %1030 = vmatmul.mubr.f32.gmra.mrb[0].mxu0 %v944
  %v1031 = vpop.f32.mrb[0].mxu0
  %v1032 = vadd.f32 %v930, %v1031
  %v1033 = vpop.f32.mrb[0].mxu0
  %1034 = vmatprep.mubr.f32.mxu0 0.0
  %1035 = vmatmul.mubr.f32.gmra.mrb[0].mxu0 %v947
  %v1036 = vpop.f32.mrb[0].mxu0
  %v1037 = vadd.f32 %v935, %v1036
  %v1038 = vpop.f32.mrb[0].mxu0
  %1039 = vdwg.mxu0
  %v1040 = vadd.f32 %v316, %v1022
  %v1041 = vadd.f32 %v317, %v1027
  %v1042 = vadd.f32 %v318, %v1032
  %v1043 = vadd.f32 %v319, %v1037
  %v1044 = vmul.f32 %v1040, 0.5
  %v1045 = vmul.f32 %v1041, 0.5
  %v1046 = vmul.f32 %v1042, 0.5
  %v1047 = vmul.f32 %v1043, 0.5
  %v1048 = vmul.f32 %v37, 0.70710677
  %v1049 = vmul.f32 %v38, 0.70710677
  %v1050 = vmul.f32 %v39, 0.70710677
  %v1051 = vmul.f32 %v40, 0.70710677
  %v1052 = vadd.f32 %v1044, %v1048
  %v1053 = vadd.f32 %v1045, %v1049
  %v1054 = vadd.f32 %v1046, %v1050
  %v1055 = vadd.f32 %v1047, %v1051
  %vm1056 = vcmask 130048
  %1057 = vst.msk [vmem:[%s10] sm:$0xff] %vm1056, %v1052
  %1058 = vst.msk [vmem:[%s10 + $0x8] sm:$0xff] %vm1056, %v1053
  %1059 = vst.msk [vmem:[%s10 + $0x10] sm:$0xff] %vm1056, %v1054
  %1060 = vst.msk [vmem:[%s10 + $0x18] sm:$0xff] %vm1056, %v1055
  %1061 = vst.msk [vmem:[%s11] sm:$0xff] %vm635, %v686
  %1062 = vst.msk [vmem:[%s11 + $0x8] sm:$0x3] %vm637, %v687
  %1063 = vst.msk [vmem:[%s11 + $0x10] sm:$0xff] %vm635, %v689
  %1064 = vst.msk [vmem:[%s11 + $0x18] sm:$0x3] %vm637, %v690
  // Predicated region
  $region42: #{tpu_custom_call.1} parent=0 // pred_check
    _
  $region43: #{tpu_custom_call.1} parent=0 // pred_check_branch
    %1066 = sbr.rel (0) target = $region45
  $region44: #{tpu_custom_call.1} parent=0 // pred_region
    _
  $region45: #{tpu_custom_call.1} parent=0 // pred_fallthru
    _
  // Predicated region
  $region46: #{tpu_custom_call.1} parent=0 // pred_check
    _
  $region47: #{tpu_custom_call.1} parent=0 // pred_check_branch
    %1068 = sbr.rel (0) target = $region49
  $region48: #{tpu_custom_call.1} parent=0 // pred_region
    _
  $region49: #{tpu_custom_call.1} parent=0 // pred_fallthru
    _
  // Predicated region
  $region50: #{tpu_custom_call.1} parent=0 // pred_check
    _
  $region51: #{tpu_custom_call.1} parent=0 // pred_check_branch
    %1070 = sbr.rel (0) target = $region53
  $region52: #{tpu_custom_call.1} parent=0 // pred_region
    _
  $region53: #{tpu_custom_call.1} parent=0 // pred_fallthru
    _
  // Predicated region
  $region54: #{tpu_custom_call.1} parent=0 // pred_check
    _
  $region55: #{tpu_custom_call.1} parent=0 // pred_check_branch
    %1072 = sbr.rel (0) target = $region57
  $region56: #{tpu_custom_call.1} parent=0 // pred_region
    _
  $region57: #{tpu_custom_call.1} parent=0 // pred_fallthru
    _

// kernel: tpu_custom_call.1
$region0: #{tpu_custom_call.1}
  #allocation0 [shape = 'u32[]', space=smem, size = 0x4, offset = 0x4, fixed_abs, tag = 'smem constant byte address 0x4 - core index']
  #allocation1 [shape = 'u32[144,128]{1,0:T(1,128)}', space=vmem, size = 0x12000, scoped, tag = 'internal scratch']
  %s0 = inlined_call_operand.vmem [shape: f32[32,16], index: 0, kind: input, shape index: {}]
  %s1 = inlined_call_operand.vmem [shape: s32[1,16], index: 1, kind: input, shape index: {}]
  %s2 = inlined_call_operand.vmem [shape: f32[2,8,32], index: 2, kind: input, shape index: {}]
  %s3 = inlined_call_operand.vmem [shape: f32[2,10,32], index: 3, kind: input, shape index: {}]
  %s4 = inlined_call_operand.vmem [shape: f32[2,10,32], index: 4, kind: input, shape index: {}]
  %s5 = inlined_call_operand.vmem [shape: f32[64,96], index: 5, kind: input, shape index: {}]
  %s6 = inlined_call_operand.vmem [shape: f32[32,32], index: 6, kind: input, shape index: {}]
  %s7 = inlined_call_operand.vmem [shape: f32[32,32], index: 7, kind: input, shape index: {}]
  %s8 = inlined_call_operand.vmem [shape: f32[96,1], index: 8, kind: input, shape index: {}]
  %s9 = inlined_call_operand.vmem [shape: f32[1,32], index: 9, kind: input, shape index: {}]
  %s10 = inlined_call_operand.vmem [shape: f32[32,16], index: 10, kind: output, shape index: {0}]
  %s11 = inlined_call_operand.vmem [shape: f32[2,10,8], index: 11, kind: output, shape index: {1}]
  %12 = xla_tuple %s10, %s11
  %s13 = sld [smem:[#allocation0]]
  $region58: #{tpu_custom_call.1} parent=0
    _
  %s15 = ssub.s32 1, %s13
  %s16 = scalar_select 0, %s15, %s13
  // Predicated region
  $region2: #{tpu_custom_call.1} parent=0 // pred_check
    _
  $region3: #{tpu_custom_call.1} parent=0 // pred_check_branch
    %18 = sbr.rel (0) target = $region5
  $region4: #{tpu_custom_call.1} parent=0 // pred_region
    _
  $region5: #{tpu_custom_call.1} parent=0 // pred_fallthru
    _
  // Predicated region
  $region6: #{tpu_custom_call.1} parent=0 // pred_check
    _
  $region7: #{tpu_custom_call.1} parent=0 // pred_check_branch
    %20 = sbr.rel (0) target = $region9
  $region8: #{tpu_custom_call.1} parent=0 // pred_region
    _
  $region9: #{tpu_custom_call.1} parent=0 // pred_fallthru
    _
  // Predicated region
  $region10: #{tpu_custom_call.1} parent=0 // pred_check
    _
  $region11: #{tpu_custom_call.1} parent=0 // pred_check_branch
    %22 = sbr.rel (0) target = $region13
  $region12: #{tpu_custom_call.1} parent=0 // pred_region
    _
  $region13: #{tpu_custom_call.1} parent=0 // pred_fallthru
    _
  // Predicated region
  $region14: #{tpu_custom_call.1} parent=0 // pred_check
    _
  $region15: #{tpu_custom_call.1} parent=0 // pred_check_branch
    %24 = sbr.rel (0) target = $region17
  $region16: #{tpu_custom_call.1} parent=0 // pred_region
    _
  $region17: #{tpu_custom_call.1} parent=0 // pred_fallthru
    _
  // Predicated region
  $region18: #{tpu_custom_call.1} parent=0 // pred_check
    _
  $region19: #{tpu_custom_call.1} parent=0 // pred_check_branch
    %26 = sbr.rel (0) target = $region21
  $region20: #{tpu_custom_call.1} parent=0 // pred_region
    _
  $region21: #{tpu_custom_call.1} parent=0 // pred_fallthru
    _
  // Predicated region
  $region22: #{tpu_custom_call.1} parent=0 // pred_check
    _
  $region23: #{tpu_custom_call.1} parent=0 // pred_check_branch
    %28 = sbr.rel (0) target = $region25
  $region24: #{tpu_custom_call.1} parent=0 // pred_region
    _
  $region25: #{tpu_custom_call.1} parent=0 // pred_fallthru
    _
  // Predicated region
  $region26: #{tpu_custom_call.1} parent=0 // pred_check
    _
  $region27: #{tpu_custom_call.1} parent=0 // pred_check_branch
    %30 = sbr.rel (0) target = $region29
  $region28: #{tpu_custom_call.1} parent=0 // pred_region
    _
  $region29: #{tpu_custom_call.1} parent=0 // pred_fallthru
    _
  // Predicated region
  $region30: #{tpu_custom_call.1} parent=0 // pred_check
    _
  $region31: #{tpu_custom_call.1} parent=0 // pred_check_branch
    %32 = sbr.rel (0) target = $region33
  $region32: #{tpu_custom_call.1} parent=0 // pred_region
    _
  $region33: #{tpu_custom_call.1} parent=0 // pred_fallthru
    _
  // Predicated region
  $region34: #{tpu_custom_call.1} parent=0 // pred_check
    _
  $region35: #{tpu_custom_call.1} parent=0 // pred_check_branch
    %34 = sbr.rel (0) target = $region37
  $region36: #{tpu_custom_call.1} parent=0 // pred_region
    _
  $region37: #{tpu_custom_call.1} parent=0 // pred_fallthru
    _
  // Predicated region
  $region38: #{tpu_custom_call.1} parent=0 // pred_check
    _
  $region39: #{tpu_custom_call.1} parent=0 // pred_check_branch
    %36 = sbr.rel (0) target = $region41
  $region40: #{tpu_custom_call.1} parent=0 // pred_region
    _
  $region41: #{tpu_custom_call.1} parent=0 // pred_fallthru
    _
  %v37 = vld [vmem:[%s0] sm:$0xff]
  %v38 = vld [vmem:[%s0 + $0x8] sm:$0xff]
  %v39 = vld [vmem:[%s0 + $0x10] sm:$0xff]
  %v40 = vld [vmem:[%s0 + $0x18] sm:$0xff]
  %v41 = vld [vmem:[%s1] sm:$0x1]
  %v42 = vld [vmem:[%s8] sm:$0xff]
  %v43 = vld [vmem:[%s8 + $0x8] sm:$0xff]
  %v44 = vld [vmem:[%s8 + $0x10] sm:$0xff]
  %v45 = vld [vmem:[%s8 + $0x18] sm:$0xff]
  %v46 = vld [vmem:[%s8 + $0x20] sm:$0xff]
  %v47 = vld [vmem:[%s8 + $0x28] sm:$0xff]
  %v48 = vld [vmem:[%s8 + $0x30] sm:$0xff]
  %v49 = vld [vmem:[%s8 + $0x38] sm:$0xff]
  %v50 = vld [vmem:[%s8 + $0x40] sm:$0xff]
  %v51 = vld [vmem:[%s8 + $0x48] sm:$0xff]
  %v52 = vld [vmem:[%s8 + $0x50] sm:$0xff]
  %v53 = vld [vmem:[%s8 + $0x58] sm:$0xff]
  %58 = vrot.lane.b32.xlu0 %v37, 2
  %v59 = vpop.permute.xlu0 %58
  %60 = vrot.lane.b32.xlu0 %v38, 2
  %v61 = vpop.permute.xlu0 %60
  %62 = vrot.lane.b32.xlu0 %v39, 2
  %v63 = vpop.permute.xlu0 %62
  %64 = vrot.lane.b32.xlu0 %v40, 2
  %v65 = vpop.permute.xlu0 %64
  %vm70 = vcmask 15360
  %v71 = vsel %vm70, 0.0, %v59
  %v72 = vsel %vm70, 0.0, %v61
  %v73 = vsel %vm70, 0.0, %v63
  %v74 = vsel %vm70, 0.0, %v65
  %vm75 = vcmp.ge.s32.totalorder %v41, 2
  %v76 = vsel %vm75, 1, 0
  %v77 = vlaneseq
  %v78 = vshrl.u32 %v77, 7
  %v79 = vsub.s32 0, %v78
  %v80 = vrot.slane %v76, %v79
  %vm81 = vcmp.eq.s32.totalorder %v80, 1
  %v82 = vsel %vm81, %v71, 0.0
  %v83 = vsel %vm81, %v72, 0.0
  %v84 = vsel %vm81, %v73, 0.0
  %v85 = vsel %vm81, %v74, 0.0
  %86 = vrot.lane.b32.xlu0 %v37, 1
  %v87 = vpop.permute.xlu0 %86
  %88 = vrot.lane.b32.xlu0 %v38, 1
  %v89 = vpop.permute.xlu0 %88
  %90 = vrot.lane.b32.xlu0 %v39, 1
  %v91 = vpop.permute.xlu0 %90
  %92 = vrot.lane.b32.xlu0 %v40, 1
  %v93 = vpop.permute.xlu0 %92
  %vm98 = vcmask 7168
  %v99 = vsel %vm98, 0.0, %v87
  %v100 = vsel %vm98, 0.0, %v89
  %v101 = vsel %vm98, 0.0, %v91
  %v102 = vsel %vm98, 0.0, %v93
  %vm103 = vcmp.ge.s32.totalorder %v41, 1
  %v104 = vsel %vm103, 1, 0
  %v105 = vlaneseq
  %v106 = vshrl.u32 %v105, 7
  %v107 = vsub.s32 0, %v106
  %v108 = vrot.slane %v104, %v107
  %vm109 = vcmp.eq.s32.totalorder %v108, 1
  %v110 = vsel %vm109, %v99, 0.0
  %v111 = vsel %vm109, %v100, 0.0
  %v112 = vsel %vm109, %v101, 0.0
  %v113 = vsel %vm109, %v102, 0.0
  %v114 = vld [vmem:[%s5] sm:$0xff]
  %v115 = vld [vmem:[%s5 + $0x8] sm:$0xff]
  %v116 = vld [vmem:[%s5 + $0x10] sm:$0xff]
  %v117 = vld [vmem:[%s5 + $0x18] sm:$0xff]
  %v118 = vld [vmem:[%s5 + $0x20] sm:$0xff]
  %v119 = vld [vmem:[%s5 + $0x28] sm:$0xff]
  %v120 = vld [vmem:[%s5 + $0x30] sm:$0xff]
  %v121 = vld [vmem:[%s5 + $0x38] sm:$0xff]
  %123 = vset.pattern.permute.xlu0 0
  %124 = vperm.xlu0 %123, %v42
  %v125 = vpop.permute.xlu0 %124
  %128 = vset.pattern.permute.xlu0 0
  %129 = vperm.xlu0 %128, %v43
  %v130 = vpop.permute.xlu0 %129
  %133 = vset.pattern.permute.xlu0 0
  %134 = vperm.xlu0 %133, %v44
  %v135 = vpop.permute.xlu0 %134
  %138 = vset.pattern.permute.xlu0 0
  %139 = vperm.xlu0 %138, %v45
  %v140 = vpop.permute.xlu0 %139
  %143 = vset.pattern.permute.xlu0 0
  %144 = vperm.xlu0 %143, %v46
  %v145 = vpop.permute.xlu0 %144
  %148 = vset.pattern.permute.xlu0 0
  %149 = vperm.xlu0 %148, %v47
  %v150 = vpop.permute.xlu0 %149
  %153 = vset.pattern.permute.xlu0 0
  %154 = vperm.xlu0 %153, %v48
  %v155 = vpop.permute.xlu0 %154
  %158 = vset.pattern.permute.xlu0 0
  %159 = vperm.xlu0 %158, %v49
  %v160 = vpop.permute.xlu0 %159
  %vm162 = vcmask 785408
  %v164 = vsel %vm162, %v114, 0
  %v167 = vsel %vm162, %v115, 0
  %v170 = vsel %vm162, %v116, 0
  %v173 = vsel %vm162, %v117, 0
  %v176 = vsel %vm162, %v118, 0
  %v179 = vsel %vm162, %v119, 0
  %v182 = vsel %vm162, %v120, 0
  %v185 = vsel %vm162, %v121, 0
  %187 = vmatprep.subr.mxu0 0.0
  %188 = vmatpush1.msra.mxu0 %v82
  %189 = vmatprep.subr.mxu0 0.0
  %190 = vmatpush1.msra.mxu0 %v83
  %191 = vmatprep.subr.mxu0 0.0
  %192 = vmatpush1.msra.mxu0 %v84
  %193 = vmatprep.subr.mxu0 0.0
  %194 = vmatpush1.msra.mxu0 %v85
  %195 = vmatprep.subr.mxu0 0.0
  %196 = vmatpush1.msra.mxu0 %v110
  %197 = vmatprep.subr.mxu0 0.0
  %198 = vmatpush1.msra.mxu0 %v111
  %199 = vmatprep.subr.mxu0 0.0
  %200 = vmatpush1.msra.mxu0 %v112
  %201 = vmatprep.subr.mxu0 0.0
  %202 = vmatpush1.msra.mxu0 %v113
  %203 = vmatprep.subr.mxu0 0.0
  %204 = vmatpush1.msra.mxu0 %v37
  %205 = vmatprep.subr.mxu0 0.0
  %206 = vmatpush1.msra.mxu0 %v38
  %207 = vmatprep.subr.mxu0 0.0
  %208 = vmatpush1.msra.mxu0 %v39
  %209 = vmatprep.subr.mxu0 0.0
  %210 = vmatpush1.msra.mxu0 %v40
  %211 = vmatprep.subr.mxu0 0.0
  %212 = vmatpush1.msra.mxu0 0.0
  %213 = vmatprep.subr.mxu0 0.0
  %214 = vmatpush1.msra.mxu0 0.0
  %215 = vmatprep.subr.mxu0 0.0
  %216 = vmatpush1.msra.mxu0 0.0
  %217 = vmatprep.subr.mxu0 0.0
  %218 = vmatpush1.msra.mxu0 0.0
  %219 = vmatprep.subr.mxu0 0.0
  %220 = vmatpush1.msra.mxu0 0.0
  %221 = vmatprep.subr.mxu0 0.0
  %222 = vmatpush1.msra.mxu0 0.0
  %223 = vmatprep.subr.mxu0 0.0
  %224 = vmatpush1.msra.mxu0 0.0
  %225 = vmatprep.subr.mxu0 0.0
  %226 = vmatpush1.msra.mxu0 0.0
  %227 = vmatprep.subr.mxu0 0.0
  %228 = vmatpush1.msra.mxu0 0.0
  %229 = vmatprep.subr.mxu0 0.0
  %230 = vmatpush1.msra.mxu0 0.0
  %231 = vmatprep.subr.mxu0 0.0
  %232 = vmatpush1.msra.mxu0 0.0
  %233 = vmatprep.subr.mxu0 0.0
  %234 = vmatpush1.msra.mxu0 0.0
  %235 = vmatprep.subr.mxu0 0.0
  %236 = vmatpush1.msra.mxu0 0.0
  %237 = vmatprep.subr.mxu0 0.0
  %238 = vmatpush1.msra.mxu0 0.0
  %239 = vmatprep.subr.mxu0 0.0
  %240 = vmatpush1.msra.mxu0 0.0
  %241 = vmatprep.subr.mxu0 0.0
  %242 = vmatpush1.msra.mxu0 0.0
  %243 = vmatprep.subr.mxu0 0.0
  %244 = vmatpush1.msra.mxu0 0.0
  %245 = vmatprep.subr.mxu0 0.0
  %246 = vmatpush1.msra.mxu0 0.0
  %247 = vmatprep.subr.mxu0 0.0
  %248 = vmatpush1.msra.mxu0 0.0
  %249 = vmatprep.subr.mxu0 0.0
  %250 = vmatpush1.msra.mxu0 0.0
  %251 = vmatprep.mubr.f32.mxu0 0.0
  %252 = vmatmul.mubr.f32.gmra.mrb[0].mxu0 %v164
  %v253 = vpop.f32.mrb[0].mxu0
  %v254 = vadd.f32 %v125, %v253
  %v255 = vpop.f32.mrb[0].mxu0
  %256 = vmatprep.mubr.f32.mxu0 0.0
  %257 = vmatmul.mubr.f32.gmra.mrb[0].mxu0 %v167
  %v258 = vpop.f32.mrb[0].mxu0
  %v259 = vadd.f32 %v130, %v258
  %v260 = vpop.f32.mrb[0].mxu0
  %261 = vmatprep.mubr.f32.mxu0 0.0
  %262 = vmatmul.mubr.f32.gmra.mrb[0].mxu0 %v170
  %v263 = vpop.f32.mrb[0].mxu0
  %v264 = vadd.f32 %v135, %v263
  %v265 = vpop.f32.mrb[0].mxu0
  %266 = vmatprep.mubr.f32.mxu0 0.0
  %267 = vmatmul.mubr.f32.gmra.mrb[0].mxu0 %v173
  %v268 = vpop.f32.mrb[0].mxu0
  %v269 = vadd.f32 %v140, %v268
  %v270 = vpop.f32.mrb[0].mxu0
  %271 = vmatprep.mubr.f32.mxu0 0.0
  %272 = vmatmul.mubr.f32.gmra.mrb[0].mxu0 %v176
  %v273 = vpop.f32.mrb[0].mxu0
  %v274 = vadd.f32 %v145, %v273
  %v275 = vpop.f32.mrb[0].mxu0
  %276 = vmatprep.mubr.f32.mxu0 0.0
  %277 = vmatmul.mubr.f32.gmra.mrb[0].mxu0 %v179
  %v278 = vpop.f32.mrb[0].mxu0
  %v279 = vadd.f32 %v150, %v278
  %v280 = vpop.f32.mrb[0].mxu0
  %281 = vmatprep.mubr.f32.mxu0 0.0
  %282 = vmatmul.mubr.f32.gmra.mrb[0].mxu0 %v182
  %v283 = vpop.f32.mrb[0].mxu0
  %v284 = vadd.f32 %v155, %v283
  %v285 = vpop.f32.mrb[0].mxu0
  %286 = vmatprep.mubr.f32.mxu0 0.0
  %287 = vmatmul.mubr.f32.gmra.mrb[0].mxu0 %v185
  %v288 = vpop.f32.mrb[0].mxu0
  %v289 = vadd.f32 %v160, %v288
  %v290 = vpop.f32.mrb[0].mxu0
  %291 = vdwg.mxu0
  %v292 = vxor.u32 %v274, 2147483648
  %v293 = vxor.u32 %v279, 2147483648
  %v294 = vxor.u32 %v284, 2147483648
  %v295 = vxor.u32 %v289, 2147483648
  %v296 = vmul.f32 %v292, 1.442695
  %v297 = vpow.pop %v296
  %v298 = vmul.f32 %v293, 1.442695
  %v299 = vpow.pop %v298
  %v300 = vmul.f32 %v294, 1.442695
  %v301 = vpow.pop %v300
  %v302 = vmul.f32 %v295, 1.442695
  %v303 = vpow.pop %v302
  %v304 = vadd.f32 %v297, 1.0
  %v305 = vadd.f32 %v299, 1.0
  %v306 = vadd.f32 %v301, 1.0
  %v307 = vadd.f32 %v303, 1.0
  %v308 = vrcp.pop %v304
  %v309 = vmul.f32 1.0, %v308
  %v310 = vrcp.pop %v305
  %v311 = vmul.f32 1.0, %v310
  %v312 = vrcp.pop %v306
  %v313 = vmul.f32 1.0, %v312
  %v314 = vrcp.pop %v307
  %v315 = vmul.f32 1.0, %v314
  %v316 = vmul.f32 %v254, %v309
  %v317 = vmul.f32 %v259, %v311
  %v318 = vmul.f32 %v264, %v313
  %v319 = vmul.f32 %v269, %v315
  %v320 = vld [vmem:[%s6] sm:$0xff]
  %v321 = vld [vmem:[%s6 + $0x8] sm:$0xff]
  %v322 = vld [vmem:[%s6 + $0x10] sm:$0xff]
  %v323 = vld [vmem:[%s6 + $0x18] sm:$0xff]
  %v324 = vld [vmem:[%s9] sm:$0x1]
  %v326 = vlaneseq
  %v327 = vshrl.u32 %v326, 7
  %v328 = vsub.s32 0, %v327
  %v329 = vrot.slane %v324, %v328
  %331 = vxpose.xlu0.b32.start [1/16] %v316, 128
  %332 = vxpose.xlu0.b32.cont [2/16] %v317, 128
  %333 = vxpose.xlu0.b32.cont [3/16] %v318, 128
  %334 = vxpose.xlu0.b32.cont [4/16] %v319, 128
  %335 = vxpose.xlu0.b32.cont [5/16] 0.0, 128
  %336 = vxpose.xlu0.b32.cont [6/16] 0.0, 128
  %337 = vxpose.xlu0.b32.cont [7/16] 0.0, 128
  %338 = vxpose.xlu0.b32.cont [8/16] 0.0, 128
  %339 = vxpose.xlu0.b32.cont [9/16] 0.0, 128
  %340 = vxpose.xlu0.b32.cont [10/16] 0.0, 128
  %341 = vxpose.xlu0.b32.cont [11/16] 0.0, 128
  %342 = vxpose.xlu0.b32.cont [12/16] 0.0, 128
  %343 = vxpose.xlu0.b32.cont [13/16] 0.0, 128
  %344 = vxpose.xlu0.b32.cont [14/16] 0.0, 128
  %345 = vxpose.xlu0.b32.cont [15/16] 0.0, 128
  %346 = vxpose.xlu0.b32.end [16/16] 0.0, 128
  %v347 = vpop.trf.xlu0
  %v348 = vpop.trf.xlu0
  %v349 = vpop.trf.xlu0
  %v350 = vpop.trf.xlu0
  %v351 = vpop.trf.xlu0
  %v352 = vpop.trf.xlu0
  %v353 = vpop.trf.xlu0
  %v354 = vpop.trf.xlu0
  %v355 = vpop.trf.xlu0
  %v356 = vpop.trf.xlu0
  %v357 = vpop.trf.xlu0
  %v358 = vpop.trf.xlu0
  %v359 = vpop.trf.xlu0
  %v360 = vpop.trf.xlu0
  %v361 = vpop.trf.xlu0
  %v362 = vpop.trf.xlu0
  %vm363 = vcmask 261120
  %v365 = vsel %vm363, %v347, 0
  %v368 = vsel %vm363, %v348, 0
  %v371 = vsel %vm363, %v320, 0
  %v374 = vsel %vm363, %v321, 0
  %v377 = vsel %vm363, %v322, 0
  %v380 = vsel %vm363, %v323, 0
  %382 = vmatprep.subr.mxu0 0.0
  %383 = vmatpush1.xpose.msra.mxu0 %v371
  %384 = vmatprep.subr.mxu0 0.0
  %385 = vmatpush1.xpose.msra.mxu0 %v374
  %386 = vmatprep.subr.mxu0 0.0
  %387 = vmatpush1.xpose.msra.mxu0 %v377
  %388 = vmatprep.subr.mxu0 0.0
  %389 = vmatpush1.xpose.msra.mxu0 %v380
  %390 = vmatprep.subr.mxu0 0.0
  %391 = vmatpush1.xpose.msra.mxu0 0.0
  %392 = vmatprep.subr.mxu0 0.0
  %393 = vmatpush1.xpose.msra.mxu0 0.0
  %394 = vmatprep.subr.mxu0 0.0
  %395 = vmatpush1.xpose.msra.mxu0 0.0
  %396 = vmatprep.subr.mxu0 0.0
  %397 = vmatpush1.xpose.msra.mxu0 0.0
  %398 = vmatprep.subr.mxu0 0.0
  %399 = vmatpush1.xpose.msra.mxu0 0.0
  %400 = vmatprep.subr.mxu0 0.0
  %401 = vmatpush1.xpose.msra.mxu0 0.0
  %402 = vmatprep.subr.mxu0 0.0
  %403 = vmatpush1.xpose.msra.mxu0 0.0
  %404 = vmatprep.subr.mxu0 0.0
  %405 = vmatpush1.xpose.msra.mxu0 0.0
  %406 = vmatprep.subr.mxu0 0.0
  %407 = vmatpush1.xpose.msra.mxu0 0.0
  %408 = vmatprep.subr.mxu0 0.0
  %409 = vmatpush1.xpose.msra.mxu0 0.0
  %410 = vmatprep.subr.mxu0 0.0
  %411 = vmatpush1.xpose.msra.mxu0 0.0
  %412 = vmatprep.subr.mxu0 0.0
  %413 = vmatpush1.xpose.msra.mxu0 0.0
  %414 = vmatprep.subr.mxu0 0.0
  %415 = vmatpush1.xpose.msra.mxu0 0.0
  %416 = vmatprep.subr.mxu0 0.0
  %417 = vmatpush1.xpose.msra.mxu0 0.0
  %418 = vmatprep.subr.mxu0 0.0
  %419 = vmatpush1.xpose.msra.mxu0 0.0
  %420 = vmatprep.subr.mxu0 0.0
  %421 = vmatpush1.xpose.msra.mxu0 0.0
  %422 = vmatprep.subr.mxu0 0.0
  %423 = vmatpush1.xpose.msra.mxu0 0.0
  %424 = vmatprep.subr.mxu0 0.0
  %425 = vmatpush1.xpose.msra.mxu0 0.0
  %426 = vmatprep.subr.mxu0 0.0
  %427 = vmatpush1.xpose.msra.mxu0 0.0
  %428 = vmatprep.subr.mxu0 0.0
  %429 = vmatpush1.xpose.msra.mxu0 0.0
  %430 = vmatprep.subr.mxu0 0.0
  %431 = vmatpush1.xpose.msra.mxu0 0.0
  %432 = vmatprep.subr.mxu0 0.0
  %433 = vmatpush1.xpose.msra.mxu0 0.0
  %434 = vmatprep.subr.mxu0 0.0
  %435 = vmatpush1.xpose.msra.mxu0 0.0
  %436 = vmatprep.subr.mxu0 0.0
  %437 = vmatpush1.xpose.msra.mxu0 0.0
  %438 = vmatprep.subr.mxu0 0.0
  %439 = vmatpush1.xpose.msra.mxu0 0.0
  %440 = vmatprep.subr.mxu0 0.0
  %441 = vmatpush1.xpose.msra.mxu0 0.0
  %442 = vmatprep.subr.mxu0 0.0
  %443 = vmatpush1.xpose.msra.mxu0 0.0
  %444 = vmatprep.subr.mxu0 0.0
  %445 = vmatpush1.xpose.msra.mxu0 0.0
  %446 = vmatprep.mubr.f32.mxu0 0.0
  %447 = vmatmul.mubr.f32.gmra.mrb[0].mxu0 %v365
  %v448 = vpop.f32.mrb[0].mxu0
  %v449 = vadd.f32 %v329, %v448
  %v450 = vpop.f32.mrb[0].mxu0
  %451 = vmatprep.mubr.f32.mxu0 0.0
  %452 = vmatmul.mubr.f32.gmra.mrb[0].mxu0 %v368
  %v453 = vpop.f32.mrb[0].mxu0
  %v454 = vadd.f32 %v329, %v453
  %v455 = vpop.f32.mrb[0].mxu0
  %456 = vdwg.mxu0
  %v457 = vld [vmem:[%s2] sm:$0xff]
  %v458 = vld [vmem:[%s2 + $0x8] sm:$0xff]
  %v459 = vadd.f32 %v449, %v457
  %v460 = vadd.f32 %v454, %v458
  %v461 = vmul.f32 %v459, 0.70710677
  %v462 = vmul.f32 %v460, 0.70710677
  %v463 = vld [vmem:[%s3] sm:$0xff]
  %v464 = vld [vmem:[%s3 + $0x8] sm:$0x3]
  %v465 = vld [vmem:[%s3 + $0x10] sm:$0xff]
  %v466 = vld [vmem:[%s3 + $0x18] sm:$0x3]
  %v468 = vsel %vm363, %v463, 0
  %v471 = vsel %vm363, %v464, 0
  %v474 = vsel %vm363, %v461, 0
  %476 = vmatprep.subr.mxu0 0.0
  %477 = vmatpush1.xpose.msra.mxu0 %v474
  %478 = vmatprep.subr.mxu0 0.0
  %479 = vmatpush1.xpose.msra.mxu0 0.0
  %480 = vmatprep.subr.mxu0 0.0
  %481 = vmatpush1.xpose.msra.mxu0 0.0
  %482 = vmatprep.subr.mxu0 0.0
  %483 = vmatpush1.xpose.msra.mxu0 0.0
  %484 = vmatprep.subr.mxu0 0.0
  %485 = vmatpush1.xpose.msra.mxu0 0.0
  %486 = vmatprep.subr.mxu0 0.0
  %487 = vmatpush1.xpose.msra.mxu0 0.0
  %488 = vmatprep.subr.mxu0 0.0
  %489 = vmatpush1.xpose.msra.mxu0 0.0
  %490 = vmatprep.subr.mxu0 0.0
  %491 = vmatpush1.xpose.msra.mxu0 0.0
  %492 = vmatprep.subr.mxu0 0.0
  %493 = vmatpush1.xpose.msra.mxu0 0.0
  %494 = vmatprep.subr.mxu0 0.0
  %495 = vmatpush1.xpose.msra.mxu0 0.0
  %496 = vmatprep.subr.mxu0 0.0
  %497 = vmatpush1.xpose.msra.mxu0 0.0
  %498 = vmatprep.subr.mxu0 0.0
  %499 = vmatpush1.xpose.msra.mxu0 0.0
  %500 = vmatprep.subr.mxu0 0.0
  %501 = vmatpush1.xpose.msra.mxu0 0.0
  %502 = vmatprep.subr.mxu0 0.0
  %503 = vmatpush1.xpose.msra.mxu0 0.0
  %504 = vmatprep.subr.mxu0 0.0
  %505 = vmatpush1.xpose.msra.mxu0 0.0
  %506 = vmatprep.subr.mxu0 0.0
  %507 = vmatpush1.xpose.msra.mxu0 0.0
  %508 = vmatprep.subr.mxu0 0.0
  %509 = vmatpush1.xpose.msra.mxu0 0.0
  %510 = vmatprep.subr.mxu0 0.0
  %511 = vmatpush1.xpose.msra.mxu0 0.0
  %512 = vmatprep.subr.mxu0 0.0
  %513 = vmatpush1.xpose.msra.mxu0 0.0
  %514 = vmatprep.subr.mxu0 0.0
  %515 = vmatpush1.xpose.msra.mxu0 0.0
  %516 = vmatprep.subr.mxu0 0.0
  %517 = vmatpush1.xpose.msra.mxu0 0.0
  %518 = vmatprep.subr.mxu0 0.0
  %519 = vmatpush1.xpose.msra.mxu0 0.0
  %520 = vmatprep.subr.mxu0 0.0
  %521 = vmatpush1.xpose.msra.mxu0 0.0
  %522 = vmatprep.subr.mxu0 0.0
  %523 = vmatpush1.xpose.msra.mxu0 0.0
  %524 = vmatprep.subr.mxu0 0.0
  %525 = vmatpush1.xpose.msra.mxu0 0.0
  %526 = vmatprep.subr.mxu0 0.0
  %527 = vmatpush1.xpose.msra.mxu0 0.0
  %528 = vmatprep.subr.mxu0 0.0
  %529 = vmatpush1.xpose.msra.mxu0 0.0
  %530 = vmatprep.subr.mxu0 0.0
  %531 = vmatpush1.xpose.msra.mxu0 0.0
  %532 = vmatprep.subr.mxu0 0.0
  %533 = vmatpush1.xpose.msra.mxu0 0.0
  %534 = vmatprep.subr.mxu0 0.0
  %535 = vmatpush1.xpose.msra.mxu0 0.0
  %536 = vmatprep.subr.mxu0 0.0
  %537 = vmatpush1.xpose.msra.mxu0 0.0
  %538 = vmatprep.subr.mxu0 0.0
  %539 = vmatpush1.xpose.msra.mxu0 0.0
  %540 = vmatprep.mubr.f32.mxu0 0.0
  %541 = vmatmul.mubr.f32.gmra.mrb[0].mxu0 %v468
  %v542 = vpop.f32.mrb[0].mxu0
  %v543 = vadd.f32 0.0, %v542
  %v544 = vpop.f32.mrb[0].mxu0
  %545 = vmatprep.mubr.f32.mxu0 0.0
  %546 = vmatmul.mubr.f32.gmra.mrb[0].mxu0 %v471
  %v547 = vpop.f32.mrb[0].mxu0
  %v548 = vadd.f32 0.0, %v547
  %v549 = vpop.f32.mrb[0].mxu0
  %550 = vdwg.mxu0
  %v552 = vsel %vm363, %v465, 0
  %v555 = vsel %vm363, %v466, 0
  %v558 = vsel %vm363, %v462, 0
  %560 = vmatprep.subr.mxu0 0.0
  %561 = vmatpush1.xpose.msra.mxu0 %v558
  %562 = vmatprep.subr.mxu0 0.0
  %563 = vmatpush1.xpose.msra.mxu0 0.0
  %564 = vmatprep.subr.mxu0 0.0
  %565 = vmatpush1.xpose.msra.mxu0 0.0
  %566 = vmatprep.subr.mxu0 0.0
  %567 = vmatpush1.xpose.msra.mxu0 0.0
  %568 = vmatprep.subr.mxu0 0.0
  %569 = vmatpush1.xpose.msra.mxu0 0.0
  %570 = vmatprep.subr.mxu0 0.0
  %571 = vmatpush1.xpose.msra.mxu0 0.0
  %572 = vmatprep.subr.mxu0 0.0
  %573 = vmatpush1.xpose.msra.mxu0 0.0
  %574 = vmatprep.subr.mxu0 0.0
  %575 = vmatpush1.xpose.msra.mxu0 0.0
  %576 = vmatprep.subr.mxu0 0.0
  %577 = vmatpush1.xpose.msra.mxu0 0.0
  %578 = vmatprep.subr.mxu0 0.0
  %579 = vmatpush1.xpose.msra.mxu0 0.0
  %580 = vmatprep.subr.mxu0 0.0
  %581 = vmatpush1.xpose.msra.mxu0 0.0
  %582 = vmatprep.subr.mxu0 0.0
  %583 = vmatpush1.xpose.msra.mxu0 0.0
  %584 = vmatprep.subr.mxu0 0.0
  %585 = vmatpush1.xpose.msra.mxu0 0.0
  %586 = vmatprep.subr.mxu0 0.0
  %587 = vmatpush1.xpose.msra.mxu0 0.0
  %588 = vmatprep.subr.mxu0 0.0
  %589 = vmatpush1.xpose.msra.mxu0 0.0
  %590 = vmatprep.subr.mxu0 0.0
  %591 = vmatpush1.xpose.msra.mxu0 0.0
  %592 = vmatprep.subr.mxu0 0.0
  %593 = vmatpush1.xpose.msra.mxu0 0.0
  %594 = vmatprep.subr.mxu0 0.0
  %595 = vmatpush1.xpose.msra.mxu0 0.0
  %596 = vmatprep.subr.mxu0 0.0
  %597 = vmatpush1.xpose.msra.mxu0 0.0
  %598 = vmatprep.subr.mxu0 0.0
  %599 = vmatpush1.xpose.msra.mxu0 0.0
  %600 = vmatprep.subr.mxu0 0.0
  %601 = vmatpush1.xpose.msra.mxu0 0.0
  %602 = vmatprep.subr.mxu0 0.0
  %603 = vmatpush1.xpose.msra.mxu0 0.0
  %604 = vmatprep.subr.mxu0 0.0
  %605 = vmatpush1.xpose.msra.mxu0 0.0
  %606 = vmatprep.subr.mxu0 0.0
  %607 = vmatpush1.xpose.msra.mxu0 0.0
  %608 = vmatprep.subr.mxu0 0.0
  %609 = vmatpush1.xpose.msra.mxu0 0.0
  %610 = vmatprep.subr.mxu0 0.0
  %611 = vmatpush1.xpose.msra.mxu0 0.0
  %612 = vmatprep.subr.mxu0 0.0
  %613 = vmatpush1.xpose.msra.mxu0 0.0
  %614 = vmatprep.subr.mxu0 0.0
  %615 = vmatpush1.xpose.msra.mxu0 0.0
  %616 = vmatprep.subr.mxu0 0.0
  %617 = vmatpush1.xpose.msra.mxu0 0.0
  %618 = vmatprep.subr.mxu0 0.0
  %619 = vmatpush1.xpose.msra.mxu0 0.0
  %620 = vmatprep.subr.mxu0 0.0
  %621 = vmatpush1.xpose.msra.mxu0 0.0
  %622 = vmatprep.subr.mxu0 0.0
  %623 = vmatpush1.xpose.msra.mxu0 0.0
  %624 = vmatprep.mubr.f32.mxu0 0.0
  %625 = vmatmul.mubr.f32.gmra.mrb[0].mxu0 %v552
  %v626 = vpop.f32.mrb[0].mxu0
  %v627 = vadd.f32 0.0, %v626
  %v628 = vpop.f32.mrb[0].mxu0
  %629 = vmatprep.mubr.f32.mxu0 0.0
  %630 = vmatmul.mubr.f32.gmra.mrb[0].mxu0 %v555
  %v631 = vpop.f32.mrb[0].mxu0
  %v632 = vadd.f32 0.0, %v631
  %v633 = vpop.f32.mrb[0].mxu0
  %634 = vdwg.mxu0
  %vm635 = vcmask 64512
  %v636 = vsel %vm635, %v543, -inf
  %vm637 = vcmask 58368
  %v638 = vsel %vm637, %v548, -inf
  %v639 = vmax.f32 %v636, %v638
  %v640 = vrot.slane %v639, 4
  %v641 = vmax.f32 %v639, %v640
  %v642 = vrot.slane %v641, 2
  %v643 = vmax.f32 %v641, %v642
  %v644 = vrot.slane %v643, 1
  %v645 = vmax.f32 %v643, %v644
  %v646 = vsel %vm635, %v627, -inf
  %v647 = vsel %vm637, %v632, -inf
  %v648 = vmax.f32 %v646, %v647
  %v649 = vrot.slane %v648, 4
  %v650 = vmax.f32 %v648, %v649
  %v651 = vrot.slane %v650, 2
  %v652 = vmax.f32 %v650, %v651
  %v653 = vrot.slane %v652, 1
  %v654 = vmax.f32 %v652, %v653
  %v655 = vsub.f32 %v543, %v645
  %v656 = vsub.f32 %v548, %v645
  %v657 = vsub.f32 %v627, %v654
  %v658 = vsub.f32 %v632, %v654
  %v659 = vmul.f32 %v655, 1.442695
  %v660 = vpow.pop %v659
  %v661 = vmul.f32 %v656, 1.442695
  %v662 = vpow.pop %v661
  %v663 = vmul.f32 %v657, 1.442695
  %v664 = vpow.pop %v663
  %v665 = vmul.f32 %v658, 1.442695
  %v666 = vpow.pop %v665
  %v667 = vsel %vm635, %v660, 0.0
  %v668 = vsel %vm637, %v662, 0.0
  %v669 = vadd.f32 %v667, %v668
  %v670 = vrot.slane %v669, 4
  %v671 = vadd.f32 %v669, %v670
  %v672 = vrot.slane %v671, 2
  %v673 = vadd.f32 %v671, %v672
  %v674 = vrot.slane %v673, 1
  %v675 = vadd.f32 %v673, %v674
  %v676 = vsel %vm635, %v664, 0.0
  %v677 = vsel %vm637, %v666, 0.0
  %v678 = vadd.f32 %v676, %v677
  %v679 = vrot.slane %v678, 4
  %v680 = vadd.f32 %v678, %v679
  %v681 = vrot.slane %v680, 2
  %v682 = vadd.f32 %v680, %v681
  %v683 = vrot.slane %v682, 1
  %v684 = vadd.f32 %v682, %v683
  %v685 = vrcp.pop %v675
  %v686 = vmul.f32 %v660, %v685
  %v687 = vmul.f32 %v662, %v685
  %v688 = vrcp.pop %v684
  %v689 = vmul.f32 %v664, %v688
  %v690 = vmul.f32 %v666, %v688
  %v691 = vld [vmem:[%s4] sm:$0xff]
  %v692 = vld [vmem:[%s4 + $0x8] sm:$0x3]
  %v693 = vld [vmem:[%s4 + $0x10] sm:$0xff]
  %v694 = vld [vmem:[%s4 + $0x18] sm:$0x3]
  %695 = vxpose.xlu0.b32.start [1/16] %v686, 128
  %696 = vxpose.xlu0.b32.cont [2/16] %v687, 128
  %697 = vxpose.xlu0.b32.cont [3/16] 0.0, 128
  %698 = vxpose.xlu0.b32.cont [4/16] 0.0, 128
  %699 = vxpose.xlu0.b32.cont [5/16] 0.0, 128
  %700 = vxpose.xlu0.b32.cont [6/16] 0.0, 128
  %701 = vxpose.xlu0.b32.cont [7/16] 0.0, 128
  %702 = vxpose.xlu0.b32.cont [8/16] 0.0, 128
  %703 = vxpose.xlu0.b32.cont [9/16] 0.0, 128
  %704 = vxpose.xlu0.b32.cont [10/16] 0.0, 128
  %705 = vxpose.xlu0.b32.cont [11/16] 0.0, 128
  %706 = vxpose.xlu0.b32.cont [12/16] 0.0, 128
  %707 = vxpose.xlu0.b32.cont [13/16] 0.0, 128
  %708 = vxpose.xlu0.b32.cont [14/16] 0.0, 128
  %709 = vxpose.xlu0.b32.cont [15/16] 0.0, 128
  %710 = vxpose.xlu0.b32.end [16/16] 0.0, 128
  %v711 = vpop.trf.xlu0
  %v712 = vpop.trf.xlu0
  %v713 = vpop.trf.xlu0
  %v714 = vpop.trf.xlu0
  %v715 = vpop.trf.xlu0
  %v716 = vpop.trf.xlu0
  %v717 = vpop.trf.xlu0
  %v718 = vpop.trf.xlu0
  %v719 = vpop.trf.xlu0
  %v720 = vpop.trf.xlu0
  %v721 = vpop.trf.xlu0
  %v722 = vpop.trf.xlu0
  %v723 = vpop.trf.xlu0
  %v724 = vpop.trf.xlu0
  %v725 = vpop.trf.xlu0
  %v726 = vpop.trf.xlu0
  %vm727 = vcmask 80896
  %v729 = vsel %vm727, %v711, 0
  %vm731 = vcmask 1041408
  %v733 = vsel %vm731, %v692, 0
  %735 = vmatprep.subr.mxu0 0.0
  %736 = vmatpush1.msra.mxu0 %v691
  %737 = vmatprep.subr.mxu0 0.0
  %738 = vmatpush1.msra.mxu0 %v733
  %739 = vmatprep.subr.mxu0 0.0
  %740 = vmatpush1.msra.mxu0 0.0
  %741 = vmatprep.subr.mxu0 0.0
  %742 = vmatpush1.msra.mxu0 0.0
  %743 = vmatprep.subr.mxu0 0.0
  %744 = vmatpush1.msra.mxu0 0.0
  %745 = vmatprep.subr.mxu0 0.0
  %746 = vmatpush1.msra.mxu0 0.0
  %747 = vmatprep.subr.mxu0 0.0
  %748 = vmatpush1.msra.mxu0 0.0
  %749 = vmatprep.subr.mxu0 0.0
  %750 = vmatpush1.msra.mxu0 0.0
  %751 = vmatprep.subr.mxu0 0.0
  %752 = vmatpush1.msra.mxu0 0.0
  %753 = vmatprep.subr.mxu0 0.0
  %754 = vmatpush1.msra.mxu0 0.0
  %755 = vmatprep.subr.mxu0 0.0
  %756 = vmatpush1.msra.mxu0 0.0
  %757 = vmatprep.subr.mxu0 0.0
  %758 = vmatpush1.msra.mxu0 0.0
  %759 = vmatprep.subr.mxu0 0.0
  %760 = vmatpush1.msra.mxu0 0.0
  %761 = vmatprep.subr.mxu0 0.0
  %762 = vmatpush1.msra.mxu0 0.0
  %763 = vmatprep.subr.mxu0 0.0
  %764 = vmatpush1.msra.mxu0 0.0
  %765 = vmatprep.subr.mxu0 0.0
  %766 = vmatpush1.msra.mxu0 0.0
  %767 = vmatprep.subr.mxu0 0.0
  %768 = vmatpush1.msra.mxu0 0.0
  %769 = vmatprep.subr.mxu0 0.0
  %770 = vmatpush1.msra.mxu0 0.0
  %771 = vmatprep.subr.mxu0 0.0
  %772 = vmatpush1.msra.mxu0 0.0
  %773 = vmatprep.subr.mxu0 0.0
  %774 = vmatpush1.msra.mxu0 0.0
  %775 = vmatprep.subr.mxu0 0.0
  %776 = vmatpush1.msra.mxu0 0.0
  %777 = vmatprep.subr.mxu0 0.0
  %778 = vmatpush1.msra.mxu0 0.0
  %779 = vmatprep.subr.mxu0 0.0
  %780 = vmatpush1.msra.mxu0 0.0
  %781 = vmatprep.subr.mxu0 0.0
  %782 = vmatpush1.msra.mxu0 0.0
  %783 = vmatprep.subr.mxu0 0.0
  %784 = vmatpush1.msra.mxu0 0.0
  %785 = vmatprep.subr.mxu0 0.0
  %786 = vmatpush1.msra.mxu0 0.0
  %787 = vmatprep.subr.mxu0 0.0
  %788 = vmatpush1.msra.mxu0 0.0
  %789 = vmatprep.subr.mxu0 0.0
  %790 = vmatpush1.msra.mxu0 0.0
  %791 = vmatprep.subr.mxu0 0.0
  %792 = vmatpush1.msra.mxu0 0.0
  %793 = vmatprep.subr.mxu0 0.0
  %794 = vmatpush1.msra.mxu0 0.0
  %795 = vmatprep.subr.mxu0 0.0
  %796 = vmatpush1.msra.mxu0 0.0
  %797 = vmatprep.subr.mxu0 0.0
  %798 = vmatpush1.msra.mxu0 0.0
  %799 = vmatprep.mubr.f32.mxu0 0.0
  %800 = vmatmul.mubr.f32.gmra.mrb[0].mxu0 %v729
  %v801 = vpop.f32.mrb[0].mxu0
  %v802 = vadd.f32 0.0, %v801
  %v803 = vpop.f32.mrb[0].mxu0
  %804 = vdwg.mxu0
  %805 = vxpose.xlu0.b32.start [1/16] %v689, 128
  %806 = vxpose.xlu0.b32.cont [2/16] %v690, 128
  %807 = vxpose.xlu0.b32.cont [3/16] 0.0, 128
  %808 = vxpose.xlu0.b32.cont [4/16] 0.0, 128
  %809 = vxpose.xlu0.b32.cont [5/16] 0.0, 128
  %810 = vxpose.xlu0.b32.cont [6/16] 0.0, 128
  %811 = vxpose.xlu0.b32.cont [7/16] 0.0, 128
  %812 = vxpose.xlu0.b32.cont [8/16] 0.0, 128
  %813 = vxpose.xlu0.b32.cont [9/16] 0.0, 128
  %814 = vxpose.xlu0.b32.cont [10/16] 0.0, 128
  %815 = vxpose.xlu0.b32.cont [11/16] 0.0, 128
  %816 = vxpose.xlu0.b32.cont [12/16] 0.0, 128
  %817 = vxpose.xlu0.b32.cont [13/16] 0.0, 128
  %818 = vxpose.xlu0.b32.cont [14/16] 0.0, 128
  %819 = vxpose.xlu0.b32.cont [15/16] 0.0, 128
  %820 = vxpose.xlu0.b32.end [16/16] 0.0, 128
  %v821 = vpop.trf.xlu0
  %v822 = vpop.trf.xlu0
  %v823 = vpop.trf.xlu0
  %v824 = vpop.trf.xlu0
  %v825 = vpop.trf.xlu0
  %v826 = vpop.trf.xlu0
  %v827 = vpop.trf.xlu0
  %v828 = vpop.trf.xlu0
  %v829 = vpop.trf.xlu0
  %v830 = vpop.trf.xlu0
  %v831 = vpop.trf.xlu0
  %v832 = vpop.trf.xlu0
  %v833 = vpop.trf.xlu0
  %v834 = vpop.trf.xlu0
  %v835 = vpop.trf.xlu0
  %v836 = vpop.trf.xlu0
  %v838 = vsel %vm727, %v821, 0
  %v841 = vsel %vm731, %v694, 0
  %843 = vmatprep.subr.mxu0 0.0
  %844 = vmatpush1.msra.mxu0 %v693
  %845 = vmatprep.subr.mxu0 0.0
  %846 = vmatpush1.msra.mxu0 %v841
  %847 = vmatprep.subr.mxu0 0.0
  %848 = vmatpush1.msra.mxu0 0.0
  %849 = vmatprep.subr.mxu0 0.0
  %850 = vmatpush1.msra.mxu0 0.0
  %851 = vmatprep.subr.mxu0 0.0
  %852 = vmatpush1.msra.mxu0 0.0
  %853 = vmatprep.subr.mxu0 0.0
  %854 = vmatpush1.msra.mxu0 0.0
  %855 = vmatprep.subr.mxu0 0.0
  %856 = vmatpush1.msra.mxu0 0.0
  %857 = vmatprep.subr.mxu0 0.0
  %858 = vmatpush1.msra.mxu0 0.0
  %859 = vmatprep.subr.mxu0 0.0
  %860 = vmatpush1.msra.mxu0 0.0
  %861 = vmatprep.subr.mxu0 0.0
  %862 = vmatpush1.msra.mxu0 0.0
  %863 = vmatprep.subr.mxu0 0.0
  %864 = vmatpush1.msra.mxu0 0.0
  %865 = vmatprep.subr.mxu0 0.0
  %866 = vmatpush1.msra.mxu0 0.0
  %867 = vmatprep.subr.mxu0 0.0
  %868 = vmatpush1.msra.mxu0 0.0
  %869 = vmatprep.subr.mxu0 0.0
  %870 = vmatpush1.msra.mxu0 0.0
  %871 = vmatprep.subr.mxu0 0.0
  %872 = vmatpush1.msra.mxu0 0.0
  %873 = vmatprep.subr.mxu0 0.0
  %874 = vmatpush1.msra.mxu0 0.0
  %875 = vmatprep.subr.mxu0 0.0
  %876 = vmatpush1.msra.mxu0 0.0
  %877 = vmatprep.subr.mxu0 0.0
  %878 = vmatpush1.msra.mxu0 0.0
  %879 = vmatprep.subr.mxu0 0.0
  %880 = vmatpush1.msra.mxu0 0.0
  %881 = vmatprep.subr.mxu0 0.0
  %882 = vmatpush1.msra.mxu0 0.0
  %883 = vmatprep.subr.mxu0 0.0
  %884 = vmatpush1.msra.mxu0 0.0
  %885 = vmatprep.subr.mxu0 0.0
  %886 = vmatpush1.msra.mxu0 0.0
  %887 = vmatprep.subr.mxu0 0.0
  %888 = vmatpush1.msra.mxu0 0.0
  %889 = vmatprep.subr.mxu0 0.0
  %890 = vmatpush1.msra.mxu0 0.0
  %891 = vmatprep.subr.mxu0 0.0
  %892 = vmatpush1.msra.mxu0 0.0
  %893 = vmatprep.subr.mxu0 0.0
  %894 = vmatpush1.msra.mxu0 0.0
  %895 = vmatprep.subr.mxu0 0.0
  %896 = vmatpush1.msra.mxu0 0.0
  %897 = vmatprep.subr.mxu0 0.0
  %898 = vmatpush1.msra.mxu0 0.0
  %899 = vmatprep.subr.mxu0 0.0
  %900 = vmatpush1.msra.mxu0 0.0
  %901 = vmatprep.subr.mxu0 0.0
  %902 = vmatpush1.msra.mxu0 0.0
  %903 = vmatprep.subr.mxu0 0.0
  %904 = vmatpush1.msra.mxu0 0.0
  %905 = vmatprep.subr.mxu0 0.0
  %906 = vmatpush1.msra.mxu0 0.0
  %907 = vmatprep.mubr.f32.mxu0 0.0
  %908 = vmatmul.mubr.f32.gmra.mrb[0].mxu0 %v838
  %v909 = vpop.f32.mrb[0].mxu0
  %v910 = vadd.f32 0.0, %v909
  %v911 = vpop.f32.mrb[0].mxu0
  %912 = vdwg.mxu0
  %v913 = vld [vmem:[%s7] sm:$0xff]
  %v914 = vld [vmem:[%s7 + $0x8] sm:$0xff]
  %v915 = vld [vmem:[%s7 + $0x10] sm:$0xff]
  %v916 = vld [vmem:[%s7 + $0x18] sm:$0xff]
  %918 = vset.pattern.permute.xlu0 0
  %919 = vperm.xlu0 %918, %v50
  %v920 = vpop.permute.xlu0 %919
  %923 = vset.pattern.permute.xlu0 0
  %924 = vperm.xlu0 %923, %v51
  %v925 = vpop.permute.xlu0 %924
  %928 = vset.pattern.permute.xlu0 0
  %929 = vperm.xlu0 %928, %v52
  %v930 = vpop.permute.xlu0 %929
  %933 = vset.pattern.permute.xlu0 0
  %934 = vperm.xlu0 %933, %v53
  %v935 = vpop.permute.xlu0 %934
  %v938 = vsel %vm363, %v913, 0
  %v941 = vsel %vm363, %v914, 0
  %v944 = vsel %vm363, %v915, 0
  %v947 = vsel %vm363, %v916, 0
  %v950 = vsel %vm363, %v802, 0
  %v953 = vsel %vm363, %v910, 0
  %955 = vmatprep.subr.mxu0 0.0
  %956 = vmatpush1.xpose.msra.mxu0 %v950
  %957 = vmatprep.subr.mxu0 0.0
  %958 = vmatpush1.xpose.msra.mxu0 %v953
  %959 = vmatprep.subr.mxu0 0.0
  %960 = vmatpush1.xpose.msra.mxu0 0.0
  %961 = vmatprep.subr.mxu0 0.0
  %962 = vmatpush1.xpose.msra.mxu0 0.0
  %963 = vmatprep.subr.mxu0 0.0
  %964 = vmatpush1.xpose.msra.mxu0 0.0
  %965 = vmatprep.subr.mxu0 0.0
  %966 = vmatpush1.xpose.msra.mxu0 0.0
  %967 = vmatprep.subr.mxu0 0.0
  %968 = vmatpush1.xpose.msra.mxu0 0.0
  %969 = vmatprep.subr.mxu0 0.0
  %970 = vmatpush1.xpose.msra.mxu0 0.0
  %971 = vmatprep.subr.mxu0 0.0
  %972 = vmatpush1.xpose.msra.mxu0 0.0
  %973 = vmatprep.subr.mxu0 0.0
  %974 = vmatpush1.xpose.msra.mxu0 0.0
  %975 = vmatprep.subr.mxu0 0.0
  %976 = vmatpush1.xpose.msra.mxu0 0.0
  %977 = vmatprep.subr.mxu0 0.0
  %978 = vmatpush1.xpose.msra.mxu0 0.0
  %979 = vmatprep.subr.mxu0 0.0
  %980 = vmatpush1.xpose.msra.mxu0 0.0
  %981 = vmatprep.subr.mxu0 0.0
  %982 = vmatpush1.xpose.msra.mxu0 0.0
  %983 = vmatprep.subr.mxu0 0.0
  %984 = vmatpush1.xpose.msra.mxu0 0.0
  %985 = vmatprep.subr.mxu0 0.0
  %986 = vmatpush1.xpose.msra.mxu0 0.0
  %987 = vmatprep.subr.mxu0 0.0
  %988 = vmatpush1.xpose.msra.mxu0 0.0
  %989 = vmatprep.subr.mxu0 0.0
  %990 = vmatpush1.xpose.msra.mxu0 0.0
  %991 = vmatprep.subr.mxu0 0.0
  %992 = vmatpush1.xpose.msra.mxu0 0.0
  %993 = vmatprep.subr.mxu0 0.0
  %994 = vmatpush1.xpose.msra.mxu0 0.0
  %995 = vmatprep.subr.mxu0 0.0
  %996 = vmatpush1.xpose.msra.mxu0 0.0
  %997 = vmatprep.subr.mxu0 0.0
  %998 = vmatpush1.xpose.msra.mxu0 0.0
  %999 = vmatprep.subr.mxu0 0.0
  %1000 = vmatpush1.xpose.msra.mxu0 0.0
  %1001 = vmatprep.subr.mxu0 0.0
  %1002 = vmatpush1.xpose.msra.mxu0 0.0
  %1003 = vmatprep.subr.mxu0 0.0
  %1004 = vmatpush1.xpose.msra.mxu0 0.0
  %1005 = vmatprep.subr.mxu0 0.0
  %1006 = vmatpush1.xpose.msra.mxu0 0.0
  %1007 = vmatprep.subr.mxu0 0.0
  %1008 = vmatpush1.xpose.msra.mxu0 0.0
  %1009 = vmatprep.subr.mxu0 0.0
  %1010 = vmatpush1.xpose.msra.mxu0 0.0
  %1011 = vmatprep.subr.mxu0 0.0
  %1012 = vmatpush1.xpose.msra.mxu0 0.0
  %1013 = vmatprep.subr.mxu0 0.0
  %1014 = vmatpush1.xpose.msra.mxu0 0.0
  %1015 = vmatprep.subr.mxu0 0.0
  %1016 = vmatpush1.xpose.msra.mxu0 0.0
  %1017 = vmatprep.subr.mxu0 0.0
  %1018 = vmatpush1.xpose.msra.mxu0 0.0
  %1019 = vmatprep.mubr.f32.mxu0 0.0
  %1020 = vmatmul.mubr.f32.gmra.mrb[0].mxu0 %v938
  %v1021 = vpop.f32.mrb[0].mxu0
  %v1022 = vadd.f32 %v920, %v1021
  %v1023 = vpop.f32.mrb[0].mxu0
  %1024 = vmatprep.mubr.f32.mxu0 0.0
  %1025 = vmatmul.mubr.f32.gmra.mrb[0].mxu0 %v941
  %v1026 = vpop.f32.mrb[0].mxu0
  %v1027 = vadd.f32 %v925, %v1026
  %v1028 = vpop.f32.mrb[0].mxu0
  %1029 = vmatprep.mubr.f32.mxu0 0.0
  %1030 = vmatmul.mubr.f32.gmra.mrb[0].mxu0 %v944
  %v1031 = vpop.f32.mrb[0].mxu0
  %v1032 = vadd.f32 %v930, %v1031
  %v1033 = vpop.f32.mrb[0].mxu0
  %1034 = vmatprep.mubr.f32.mxu0 0.0
  %1035 = vmatmul.mubr.f32.gmra.mrb[0].mxu0 %v947
  %v1036 = vpop.f32.mrb[0].mxu0
  %v1037 = vadd.f32 %v935, %v1036
  %v1038 = vpop.f32.mrb[0].mxu0
  %1039 = vdwg.mxu0
  %v1040 = vadd.f32 %v316, %v1022
  %v1041 = vadd.f32 %v317, %v1027
  %v1042 = vadd.f32 %v318, %v1032
  %v1043 = vadd.f32 %v319, %v1037
  %v1044 = vmul.f32 %v1040, 0.5
  %v1045 = vmul.f32 %v1041, 0.5
  %v1046 = vmul.f32 %v1042, 0.5
  %v1047 = vmul.f32 %v1043, 0.5
  %v1048 = vmul.f32 %v37, 0.70710677
  %v1049 = vmul.f32 %v38, 0.70710677
  %v1050 = vmul.f32 %v39, 0.70710677
  %v1051 = vmul.f32 %v40, 0.70710677
  %v1052 = vadd.f32 %v1044, %v1048
  %v1053 = vadd.f32 %v1045, %v1049
  %v1054 = vadd.f32 %v1046, %v1050
  %v1055 = vadd.f32 %v1047, %v1051
  %vm1056 = vcmask 130048
  %1057 = vst.msk [vmem:[%s10] sm:$0xff] %vm1056, %v1052
  %1058 = vst.msk [vmem:[%s10 + $0x8] sm:$0xff] %vm1056, %v1053
  %1059 = vst.msk [vmem:[%s10 + $0x10] sm:$0xff] %vm1056, %v1054
  %1060 = vst.msk [vmem:[%s10 + $0x18] sm:$0xff] %vm1056, %v1055
  %1061 = vst.msk [vmem:[%s11] sm:$0xff] %vm635, %v686
  %1062 = vst.msk [vmem:[%s11 + $0x8] sm:$0x3] %vm637, %v687
  %1063 = vst.msk [vmem:[%s11 + $0x10] sm:$0xff] %vm635, %v689
  %1064 = vst.msk [vmem:[%s11 + $0x18] sm:$0x3] %vm637, %v690
  // Predicated region
  $region42: #{tpu_custom_call.1} parent=0 // pred_check
    _
  $region43: #{tpu_custom_call.1} parent=0 // pred_check_branch
    %1066 = sbr.rel (0) target = $region45
  $region44: #{tpu_custom_call.1} parent=0 // pred_region
    _
  $region45: #{tpu_custom_call.1} parent=0 // pred_fallthru
    _
  // Predicated region
  $region46: #{tpu_custom_call.1} parent=0 // pred_check
    _
  $region47: #{tpu_custom_call.1} parent=0 // pred_check_branch
    %1068 = sbr.rel (0) target = $region49
  $region48: #{tpu_custom_call.1} parent=0 // pred_region
    _
  $region49: #{tpu_custom_call.1} parent=0 // pred_fallthru
    _
  // Predicated region
  $region50: #{tpu_custom_call.1} parent=0 // pred_check
    _
  $region51: #{tpu_custom_call.1} parent=0 // pred_check_branch
    %1070 = sbr.rel (0) target = $region53
  $region52: #{tpu_custom_call.1} parent=0 // pred_region
    _
  $region53: #{tpu_custom_call.1} parent=0 // pred_fallthru
    _
  // Predicated region
  $region54: #{tpu_custom_call.1} parent=0 // pred_check
    _
  $region55: #{tpu_custom_call.1} parent=0 // pred_check_branch
    %1072 = sbr.rel (0) target = $region57
  $region56: #{tpu_custom_call.1} parent=0 // pred_region
    _
  $region57: #{tpu_custom_call.1} parent=0 // pred_fallthru
    _

</llo_original>
